<compile_context>
chip_gen: v7x
topology: tpu7x:2x2x1
jax: 0.10.0
libtpu: 0.0.40
codegen_flags: <defaults>
</compile_context>

<pallas_src>
import functools

import numpy as np
import jax
import jax.numpy as jnp
from jax import lax
from jax.experimental import pallas as pl
from jax.experimental.pallas import tpu as pltpu


def autopad(k, p=None):
    if p is None:
        p = k // 2
    return p


def _round_up(x, m):
    return ((x + m - 1) // m) * m


# --------------------------------------------------------------------------
# Kernel
# --------------------------------------------------------------------------
def conv_bn_silu_kernel(x_ref, w_ref, scale_ref, bias_ref, o_ref, *,
                        k, s, th, wp, h_keep, w_keep, lane_dense):
    """One grid step = (batch b) x (output-row tile r) x (out-channel tile n).

    x_ref     : (1, th + k, wp, C1)   bf16, pre-padded input rows (incl. halo)
    w_ref     : (k*k*C1, TN)          bf16, im2col-ordered conv weight
    scale_ref : (1, TN)  f32          folded BN scale  gamma / sqrt(var + eps)
    bias_ref  : (1, TN)  f32          folded BN bias   beta - mean * scale
    o_ref     : (1, h_keep, w_keep*TN) if lane_dense else (1, h_keep, w_keep, TN)
    """
    c1 = x_ref.shape[-1]
    tn = w_ref.shape[-1]
    n_pix = th * wp

    xb = x_ref[0]                                     # (th + k, wp, c1) bf16

    # Fold the k vertical taps onto the lane axis.  H slices are major-dim
    # slices (layout-free); the concat is one lane-relayout per tile.
    bands = [xb[ki:ki + th + 1] for ki in range(k)]   # each (th + 1, wp, c1)
    cat = bands[0] if k == 1 else jnp.concatenate(bands, axis=-1)
    cat = cat.reshape((th + 1) * wp, k * c1)

    # Fold the k horizontal taps with flattened-row shifts — k shifts total,
    # instead of k*k unaligned (H, W) patch copies.  The shifted tails only
    # feed output columns >= w_keep, which are discarded below.
    pieces = [cat[kj:kj + n_pix] for kj in range(k)]
    im2col = pieces[0] if k == 1 else jnp.concatenate(pieces, axis=-1)

    # Single MXU matmul: bf16 operands, contraction depth k*k*C1, f32 acc.
    acc = jnp.dot(im2col, w_ref[...], preferred_element_type=jnp.float32)
    acc = acc.reshape(th, wp, tn)

    # Keep only valid output columns and apply the conv stride in-kernel,
    # before BN/SiLU and before the HBM writeback.
    if s == 1:
        sel = acc[:h_keep, :w_keep, :]
    else:
        sel = acc[:(h_keep - 1) * s + 1:s, :(w_keep - 1) * s + 1:s, :]

    # Folded inference BatchNorm: one VPU FMA.  SiLU: exp on the EUP.
    y = sel * scale_ref[...].reshape(1, 1, tn) + bias_ref[...].reshape(1, 1, tn)
    # TODO(synk): pl.reciprocal(approx=True) is slightly faster but loosens the
    # element-wise tolerance; keep the exact reciprocal here.
    y = y * pl.reciprocal(1.0 + jnp.exp(-y))

    if lane_dense:
        o_ref[0] = y.reshape(h_keep, w_keep * tn).astype(o_ref.dtype)
    else:
        o_ref[0] = y.astype(o_ref.dtype)


# --------------------------------------------------------------------------
# Tiling heuristics
# --------------------------------------------------------------------------
def _vmem_capacity_bytes():
    try:
        return int(pltpu.get_tpu_info().vmem_capacity_bytes)
    except Exception:
        try:
            kind = jax.devices()[0].device_kind.lower()
        except Exception:
            kind = ""
        return 64 * 1024 * 1024 if ("v7" in kind or not kind) else 128 * 1024 * 1024


def _prefers_256_lane_tiles():
    try:
        kind = jax.devices()[0].device_kind.lower()
    except Exception:
        return True
    # v5e (v5 lite) has a 128-wide MXU; v6e / v7x are 256-wide.
    return not ("v5 lite" in kind or "v5e" in kind or "v5lite" in kind)


def _pick_row_tile(h_work, wp, c1, tn, k, s, in_bytes, out_bytes, budget):
    """Largest output-row tile whose per-step VMEM footprint fits the budget."""
    def footprint(th):
        n_pix = th * wp
        x_blk = (th + k) * wp * c1 * in_bytes
        cat = (th + 1) * wp * (k * c1) * in_bytes
        im2col = n_pix * (k * k * c1) * in_bytes
        acc = n_pix * tn * 4
        o_blk = (th // s) * wp * tn * max(out_bytes, 4)
        w_blk = (k * k * c1) * tn * in_bytes
        return 2 * x_blk + cat + im2col + acc + 2 * o_blk + 2 * w_blk

    if footprint(h_work) <= budget:
        return h_work, 1                       # single row tile
    step = 8 * s                               # keep output blocks 8-row aligned
    th = max((h_work // step) * step, step)
    while th > step and footprint(th) > budget:
        th -= step
    n_rt = -(-h_work // th)                    # ceil
    return th, n_rt


# --------------------------------------------------------------------------
# Wrapper
# --------------------------------------------------------------------------
def conv_forward(x, conv_w, bn_gamma, bn_beta, bn_mean, bn_var, *,
                 k=1, s=1, p=None, g=1, eps=1e-5, out_dtype=None):
    """Pallas forward of Conv: SiLU(BN(Conv2d(x, bias=False))).  NCHW in/out.

    x: (B, C1, H, W);  conv_w: (C2, C1//g, k, k);  bn_*: (C2,)
    """
    # TODO(synk): grouped / depthwise conv (g > 1) not implemented in this kernel.
    assert g == 1, "only groups == 1 supported"
    p = autopad(k, p)
    B, C1, H, W = x.shape
    C2 = conv_w.shape[0]
    assert conv_w.shape == (C2, C1, k, k)
    out_dtype = out_dtype or x.dtype
    cdt = jnp.bfloat16                           # MXU operand dtype

    # Stride-1 output extent and true (strided) output extent.
    h_full = H + 2 * p - k + 1
    w_full = W + 2 * p - k + 1
    h_out = (h_full - 1) // s + 1
    w_out = (w_full - 1) // s + 1

    # ---- output-channel tiling -------------------------------------------
    if C2 <= 128:
        tn, lane_dense = C2, True                # lane-dense packed output
    elif C2 % 256 == 0 and _prefers_256_lane_tiles():
        tn, lane_dense = 256, False
    elif C2 % 128 == 0:
        tn, lane_dense = 128, False
    else:
        # Guarded fallback: one full-C2 tile (correct, but not lane-aligned
        # and VMEM-heavier).  Prefer C2 % 128 == 0 channel counts.
        tn, lane_dense = C2, False
    n_ct = C2 // tn

    # ---- spatial row tiling under a per-generation VMEM budget ------------
    vmem_cap = _vmem_capacity_bytes()
    vmem_limit = int(min(vmem_cap * 0.9, 100 * 1024 * 1024))
    wp_pad = _round_up(W + 2 * p, 8)             # sublane-friendly width
    h_work = _round_up(h_full, s)
    th, n_rt = _pick_row_tile(h_work, wp_pad, C1, tn, k, s,
                              in_bytes=2,
                              out_bytes=np.dtype(out_dtype).itemsize,
                              budget=int(vmem_limit * 0.6))
    h_keep = th // s                             # output rows written per tile

    # ---- layout glue (wrapper): NCHW -> NHWC, bf16, spatial zero-pad -------
    # TODO(synk): keep activations NHWC/bf16 end-to-end to drop this HBM pass.
    x_nhwc = jnp.transpose(x, (0, 2, 3, 1)).astype(cdt)
    hp_pad = n_rt * th + k                       # padded rows incl. halo
    x_pad = jnp.pad(x_nhwc, ((0, 0),
                             (p, hp_pad - p - H),
                             (p, wp_pad - p - W),
                             (0, 0)))

    # im2col-ordered weight: row index = kj*(k*C1) + ki*C1 + c, cols = C2 lanes.
    w_mat = jnp.transpose(conv_w, (3, 2, 1, 0)).reshape(k * k * C1, C2).astype(cdt)

    # Fold inference BatchNorm into a per-channel scale/bias (f32).
    scale = (bn_gamma.astype(jnp.float32) /
             jnp.sqrt(bn_var.astype(jnp.float32) + eps))
    bias = bn_beta.astype(jnp.float32) - bn_mean.astype(jnp.float32) * scale
    scale = scale.reshape(1, C2)
    bias = bias.reshape(1, C2)

    kernel = functools.partial(conv_bn_silu_kernel, k=k, s=s, th=th, wp=wp_pad,
                               h_keep=h_keep, w_keep=w_out, lane_dense=lane_dense)

    # ---- BlockSpecs ---------------------------------------------------------
    if n_rt == 1:
        x_spec = pl.BlockSpec((1, hp_pad, wp_pad, C1),
                              lambda b, r, n: (b, 0, 0, 0))
    else:
        # Overlapping (haloed) row bands for large images: element-indexed H.
        x_spec = pl.BlockSpec((1, pl.Element(th + k), wp_pad, C1),
                              lambda b, r, n: (b, r * th, 0, 0))
    w_spec = pl.BlockSpec((k * k * C1, tn), lambda b, r, n: (0, n))
    sb_spec = pl.BlockSpec((1, tn), lambda b, r, n: (0, n))

    if lane_dense:
        out_shape = jax.ShapeDtypeStruct((B, n_rt * h_keep, w_out * C2), out_dtype)
        out_spec = pl.BlockSpec((1, h_keep, w_out * C2), lambda b, r, n: (b, r, 0))
    else:
        out_shape = jax.ShapeDtypeStruct((B, n_rt * h_keep, w_out, C2), out_dtype)
        out_spec = pl.BlockSpec((1, h_keep, w_out, tn), lambda b, r, n: (b, r, 0, n))

    cost = pl.CostEstimate(
        flops=int(2 * B * (n_rt * th) * wp_pad * (k * k * C1) * C2),
        transcendentals=int(B * h_out * w_out * C2),
        bytes_accessed=int(x_pad.size * 2 + w_mat.size * 2 +
                           B * h_out * w_out * C2 * np.dtype(out_dtype).itemsize))

    out = pl.pallas_call(
        kernel,
        out_shape=out_shape,
        grid=(B, n_rt, n_ct),
        in_specs=[x_spec, w_spec, sb_spec, sb_spec],
        out_specs=out_spec,
        compiler_params=pltpu.CompilerParams(
            dimension_semantics=("parallel", "parallel", "parallel"),
            vmem_limit_bytes=vmem_limit),
        cost_estimate=cost,
    )(x_pad, w_mat, scale, bias)

    out = out[:, :h_out]                          # drop padded rows
    if lane_dense:
        out = out.reshape(B, h_out, w_out, C2)
    return jnp.transpose(out, (0, 3, 1, 2))       # NHWC -> NCHW


# --------------------------------------------------------------------------
# Reference + test
# --------------------------------------------------------------------------
def conv_forward_reference(x, conv_w, gamma, beta, mean, var, *, k, s=1, p=None,
                           eps=1e-5):
    """Pure-JAX reference: Conv2d(bias=False) -> BatchNorm2d (eval) -> SiLU."""
    p = autopad(k, p)
    y = lax.conv_general_dilated(
        x.astype(jnp.float32), conv_w.astype(jnp.float32),
        window_strides=(s, s), padding=((p, p), (p, p)),
        dimension_numbers=("NCHW", "OIHW", "NCHW"),
        precision=lax.Precision.HIGHEST)
    scale = gamma / jnp.sqrt(var + eps)
    y = y * scale[None, :, None, None] + (beta - mean * scale)[None, :, None, None]
    return y * jax.nn.sigmoid(y)


if __name__ == "__main__":
    key = jax.random.PRNGKey(0)

    def bf16_exact(a):
        # Round test data through bf16 so results are insensitive to the MXU
        # operand precision path (kernel bf16 vs. XLA f32/HIGHEST reference).
        return a.astype(jnp.bfloat16).astype(jnp.float32)

    def run_case(case_key, B, C1, C2, H, W, k, s):
        kx, kw, kg, kb, km, kv = jax.random.split(case_key, 6)
        x = bf16_exact(jax.random.normal(kx, (B, C1, H, W), jnp.float32))
        w = bf16_exact(0.1 * jax.random.normal(kw, (C2, C1, k, k), jnp.float32))
        gamma = 1.0 + 0.1 * jax.random.normal(kg, (C2,), jnp.float32)
        beta = 0.1 * jax.random.normal(kb, (C2,), jnp.float32)
        mean = 0.1 * jax.random.normal(km, (C2,), jnp.float32)
        var = jnp.abs(jax.random.normal(kv, (C2,), jnp.float32)) + 0.5

        out = jax.block_until_ready(
            conv_forward(x, w, gamma, beta, mean, var, k=k, s=s))
        ref = jax.block_until_ready(
            conv_forward_reference(x, w, gamma, beta, mean, var, k=k, s=s))
        assert out.shape == ref.shape, (out.shape, ref.shape)
        np.testing.assert_allclose(np.asarray(out), np.asarray(ref),
                                   rtol=1e-3, atol=1e-3)

    k0, k1 = jax.random.split(key)
    # Conv(c1=16, c2=32, k=3, s=1): typical 3x3 block.
    run_case(k0, B=2, C1=16, C2=32, H=16, W=16, k=3, s=1)
    # Conv(c1=16, c2=32, k=1, s=1): the module's default pointwise conv.
    run_case(k1, B=2, C1=16, C2=32, H=16, W=16, k=1, s=1)
    print("KERNEL_OK")
</pallas_src>

<mosaic_0001>
module attributes {stable_mosaic.version = 11 : i64} {
  func.func @conv_bn_silu_kernel(%arg0: i32, %arg1: i32, %arg2: i32, %arg3: memref<1x19x24x16xbf16, #tpu.memory_space<vmem>>, %arg4: memref<144x32xbf16, #tpu.memory_space<vmem>>, %arg5: memref<1x32xf32, #tpu.memory_space<vmem>>, %arg6: memref<1x32xf32, #tpu.memory_space<vmem>>, %arg7: memref<1x16x512xf32, #tpu.memory_space<vmem>>) attributes {dimension_semantics = [#tpu.dimension_semantics<parallel>, #tpu.dimension_semantics<parallel>, #tpu.dimension_semantics<parallel>], iteration_bounds = array<i64: 2, 1, 1>, scalar_prefetch = 0 : i64, scratch_operands = 0 : i64, tpu.core_type = #tpu.core_type<tc>, window_params = [{transform_indices = @transform_0, window_bounds = array<i64: 1, 19, 24, 16>}, {transform_indices = @transform_1, window_bounds = array<i64: 144, 32>}, {transform_indices = @transform_2, window_bounds = array<i64: 1, 32>}, {transform_indices = @transform_3, window_bounds = array<i64: 1, 32>}, {transform_indices = @transform_4, window_bounds = array<i64: 1, 16, 512>}]} {
    %c0 = arith.constant 0 : index
    %c0_0 = arith.constant 0 : index
    %c0_1 = arith.constant 0 : index
    %c0_2 = arith.constant 0 : index
    %0 = vector.load %arg3[%c0, %c0_0, %c0_1, %c0_2] : memref<1x19x24x16xbf16, #tpu.memory_space<vmem>>, vector<1x19x24x16xbf16>
    %1 = vector.shape_cast %0 : vector<1x19x24x16xbf16> to vector<19x24x16xbf16>
    %2 = vector.extract_strided_slice %1 {offsets = [0, 0, 0], sizes = [17, 24, 16], strides = [1, 1, 1]} : vector<19x24x16xbf16> to vector<17x24x16xbf16>
    %3 = vector.extract_strided_slice %1 {offsets = [1, 0, 0], sizes = [17, 24, 16], strides = [1, 1, 1]} : vector<19x24x16xbf16> to vector<17x24x16xbf16>
    %4 = vector.extract_strided_slice %1 {offsets = [2, 0, 0], sizes = [17, 24, 16], strides = [1, 1, 1]} : vector<19x24x16xbf16> to vector<17x24x16xbf16>
    %5 = tpu.concatenate %2, %3, %4 in 2 : vector<17x24x16xbf16>, vector<17x24x16xbf16>, vector<17x24x16xbf16> -> vector<17x24x48xbf16>
    %6 = vector.shape_cast %5 : vector<17x24x48xbf16> to vector<408x48xbf16>
    %7 = vector.extract_strided_slice %6 {offsets = [0, 0], sizes = [384, 48], strides = [1, 1]} : vector<408x48xbf16> to vector<384x48xbf16>
    %8 = vector.extract_strided_slice %6 {offsets = [1, 0], sizes = [384, 48], strides = [1, 1]} : vector<408x48xbf16> to vector<384x48xbf16>
    %9 = vector.extract_strided_slice %6 {offsets = [2, 0], sizes = [384, 48], strides = [1, 1]} : vector<408x48xbf16> to vector<384x48xbf16>
    %10 = tpu.concatenate %7, %8, %9 in 1 : vector<384x48xbf16>, vector<384x48xbf16>, vector<384x48xbf16> -> vector<384x144xbf16>
    %c0_3 = arith.constant 0 : index
    %c0_4 = arith.constant 0 : index
    %11 = vector.load %arg4[%c0_3, %c0_4] : memref<144x32xbf16, #tpu.memory_space<vmem>>, vector<144x32xbf16>
    %cst = arith.constant dense<0.000000e+00> : vector<384x32xf32>
    %12 = tpu.matmul %10, %11, %cst {dimension_numbers = #tpu.dot_dimension_numbers<[1], [0], [0], [1], [0, 0, 1, 1], [], []>} : vector<384x144xbf16>, vector<144x32xbf16>, vector<384x32xf32> -> vector<384x32xf32>
    %13 = vector.shape_cast %12 : vector<384x32xf32> to vector<16x24x32xf32>
    %14 = vector.extract_strided_slice %13 {offsets = [0, 0, 0], sizes = [16, 16, 32], strides = [1, 1, 1]} : vector<16x24x32xf32> to vector<16x16x32xf32>
    %c0_5 = arith.constant 0 : index
    %c0_6 = arith.constant 0 : index
    %15 = vector.load %arg5[%c0_5, %c0_6] : memref<1x32xf32, #tpu.memory_space<vmem>>, vector<1x32xf32>
    %16 = vector.shape_cast %15 : vector<1x32xf32> to vector<1x1x32xf32>
    %17 = vector.broadcast %16 : vector<1x1x32xf32> to vector<16x16x32xf32>
    %18 = arith.mulf %14, %17 : vector<16x16x32xf32>
    %c0_7 = arith.constant 0 : index
    %c0_8 = arith.constant 0 : index
    %19 = vector.load %arg6[%c0_7, %c0_8] : memref<1x32xf32, #tpu.memory_space<vmem>>, vector<1x32xf32>
    %20 = vector.shape_cast %19 : vector<1x32xf32> to vector<1x1x32xf32>
    %21 = vector.broadcast %20 : vector<1x1x32xf32> to vector<16x16x32xf32>
    %22 = arith.addf %18, %21 : vector<16x16x32xf32>
    %cst_9 = arith.constant 0.000000e+00 : f32
    %23 = vector.broadcast %cst_9 : f32 to vector<16x16x32xf32>
    %24 = arith.subf %23, %22 : vector<16x16x32xf32>
    %25 = math.exp %24 : vector<16x16x32xf32>
    %cst_10 = arith.constant 1.000000e+00 : f32
    %26 = vector.broadcast %cst_10 : f32 to vector<16x16x32xf32>
    %27 = arith.addf %26, %25 : vector<16x16x32xf32>
    %28 = tpu.reciprocal %27 : vector<16x16x32xf32> -> vector<16x16x32xf32>
    %29 = arith.mulf %22, %28 : vector<16x16x32xf32>
    %30 = vector.shape_cast %29 : vector<16x16x32xf32> to vector<16x512xf32>
    %c0_11 = arith.constant 0 : index
    %c0_12 = arith.constant 0 : index
    %c0_13 = arith.constant 0 : index
    %31 = vector.load %arg7[%c0_11, %c0_12, %c0_13] : memref<1x16x512xf32, #tpu.memory_space<vmem>>, vector<1x16x512xf32>
    %32 = vector.shape_cast %31 : vector<1x16x512xf32> to vector<16x512xf32>
    %33 = vector.shape_cast %30 : vector<16x512xf32> to vector<1x16x512xf32>
    tpu.vector_store %arg7[%c0_11, %c0_12, %c0_13], %33 {strides = array<i32>} : memref<1x16x512xf32, #tpu.memory_space<vmem>>, vector<1x16x512xf32>,
    return
  }
  func.func @transform_0(%arg0: i32, %arg1: i32, %arg2: i32) -> (i32, i32, i32, i32) {
    %c0_i32 = arith.constant 0 : i32
    %c0_i32_0 = arith.constant 0 : i32
    %c0_i32_1 = arith.constant 0 : i32
    %c0_i32_2 = arith.constant 0 : i32
    return %arg0, %c0_i32, %c0_i32_0, %c0_i32_1 : i32, i32, i32, i32
  }
  func.func @transform_1(%arg0: i32, %arg1: i32, %arg2: i32) -> (i32, i32) {
    %c0_i32 = arith.constant 0 : i32
    %c0_i32_0 = arith.constant 0 : i32
    return %c0_i32, %arg2 : i32, i32
  }
  func.func @transform_2(%arg0: i32, %arg1: i32, %arg2: i32) -> (i32, i32) {
    %c0_i32 = arith.constant 0 : i32
    %c0_i32_0 = arith.constant 0 : i32
    return %c0_i32, %arg2 : i32, i32
  }
  func.func @transform_3(%arg0: i32, %arg1: i32, %arg2: i32) -> (i32, i32) {
    %c0_i32 = arith.constant 0 : i32
    %c0_i32_0 = arith.constant 0 : i32
    return %c0_i32, %arg2 : i32, i32
  }
  func.func @transform_4(%arg0: i32, %arg1: i32, %arg2: i32) -> (i32, i32, i32) {
    %c0_i32 = arith.constant 0 : i32
    %c0_i32_0 = arith.constant 0 : i32
    return %arg0, %arg1, %c0_i32 : i32, i32, i32
  }
}

</mosaic_0001>

<llo_original>
// kernel: tpu_custom_call.1
$region0: #{tpu_custom_call.1}
  #allocation0 [shape = 'u32[]', space=smem, size = 0x4, offset = 0x4, fixed_abs, tag = 'smem constant byte address 0x4 - core index']
  #allocation1 [shape = 'u32[144,128]{1,0:T(1,128)}', space=vmem, size = 0x12000, scoped, tag = 'internal scratch']
  %s0 = inlined_call_operand.hbm [shape: bf16[2,19,24,16], index: 0, kind: input, shape index: {}]
  %s1 = inlined_call_operand.hbm [shape: bf16[144,32], index: 1, kind: input, shape index: {}]
  %s2 = inlined_call_operand.hbm [shape: f32[1,32], index: 2, kind: input, shape index: {}]
  %s3 = inlined_call_operand.hbm [shape: f32[1,32], index: 3, kind: input, shape index: {}]
  %s4 = inlined_call_operand.hbm [shape: f32[2,16,512], index: 4, kind: output, shape index: {}]
  %s5 = sld [smem:[#allocation0]]
  $region65: #{tpu_custom_call.1} parent=0
    _
  %s7 = ssub.s32 1, %s5
  %s8 = scalar_select 0, %s7, %s5
  $region1: #{tpu_custom_call.1} parent=0
    #allocation2 [shape = 'u8[233472]{0}', space=vmem, size = 0x39000, scoped, tag = 'input window, operand 0']
    #allocation3 [shape = 's32[2]{0}', space=sflag, size = 0x8, scoped, tag = 'scoped memory for tpu_custom_call.1']
    #allocation4 [shape = 's32[2]{0}', space=sflag, size = 0x8, scoped, tag = 'scoped memory for tpu_custom_call.1']
    #allocation5 [shape = 'u8[36864]{0}', space=vmem, size = 0x9000, scoped, tag = 'input window, operand 1, single buffered']
    #allocation6 [shape = 's32[1]{0}', space=sflag, size = 0x4, scoped, tag = 'scoped memory for tpu_custom_call.1']
    #allocation7 [shape = 'u8[512]{0}', space=vmem, size = 0x400, scoped, tag = 'input window, operand 2, single buffered']
    #allocation8 [shape = 'u8[512]{0}', space=vmem, size = 0x400, scoped, tag = 'input window, operand 3, single buffered']
    #allocation9 [shape = 's32[1]{0}', space=sflag, size = 0x4, scoped, tag = 'scoped memory for tpu_custom_call.1']
    #allocation10 [shape = 'u8[65536]{0}', space=vmem, size = 0x10000, scoped, tag = 'output window, operand 0']
    %9 = vsyncpa [#allocation3], 0
    %s10 = scalar_lea.sflag [#allocation3], 1
    %11 = vsyncpa %s10, 0
    %12 = vsyncpa [#allocation6], 0
    %13 = vsyncpa [#allocation9], 0
    %14 = vsyncpa [#allocation4], 0
    %s15 = scalar_lea.sflag [#allocation4], 1
    %16 = vsyncpa %s15, 0
    loop: start=0, step=1, limit=4
    $region2: #{tpu_custom_call.1} parent=1 // loop_pre_header
      _
    $region3: #{tpu_custom_call.1} parent=1 // loop_header
      %s18 = sphi 0, %s22
      %p19 = scmp.ge.s32.totalorder %s18, 4
      %s25 = sphi 0, %s44
      %s26 = sphi 0, %s40
      %s27 = sphi 0, %s36
      %s28 = sphi 0, %s25
      %s29 = sphi 0, %s26
      %s30 = sphi 0, %s27
      %s31 = sphi 0, %s28
      %s32 = sphi 0, %s29
      %s33 = sphi 0, %s30
      %s47 = sphi 0, %s49
      %s50 = sphi 0, %s47
      %s51 = sphi 0, %s50
      %s67 = sphi 0, %s51
      %s73 = sphi 0, %s75
      %s76 = sphi 0, %s73
      %s77 = sphi 0, %s76
      %s93 = sphi 0, %s77
      %s99 = sphi 0, %s101
      %s102 = sphi 0, %s99
      %s103 = sphi 0, %s102
      %s119 = sphi 0, %s103
      %s125 = sphi 0, %s127
      %s128 = sphi 0, %s125
      %s129 = sphi 0, %s128
      %s145 = sphi 0, %s129
      %s153 = sphi 0, %s155
      %s156 = sphi 0, %s153
      %s157 = sphi 0, %s156
      %s173 = sphi 0, %s157
    $region4: #{tpu_custom_call.1} parent=1 // loop_header_branch
      %21 = sbr.rel (%p19) target = $region8
    $region5: #{tpu_custom_call.1} parent=1 // loop_body
      %s23 = ssub.s32 %s18, 1
      %s24 = ssub.s32 %s18, 2
      %s34 = sadd.s32 1, %s27
      %p35 = scmp.ge.s32.totalorder %s34, 1
      %s36 = scalar_select %p35, 0, %s34
      %s37 = sadd.s32 1, %s26
      %s38 = scalar_select %p35, %s37, %s26
      %p39 = scmp.ge.s32.totalorder %s38, 1
      %s40 = scalar_select %p39, 0, %s38
      %s41 = sadd.s32 1, %s25
      %s42 = scalar_select %p39, %s41, %s25
      %p43 = scmp.ge.s32.totalorder %s42, 2
      %s44 = scalar_select %p43, 0, %s42
      %s45 = ssub.s32 %s25, %s44
      %p46 = scmp.eq.s32.totalorder %s45, 0
      %s48 = sadd.s32 %s47, 1
      %s49 = scalar_select %p46, %s47, %s48
      %p52 = pneg %p46
      %p53 = scmp.eq.s32.totalorder %s18, 1
      %p54 = por %p52, %p53
      %p55 = scmp.ne.s32.totalorder %s47, %s50
      %p56 = scmp.eq.s32.totalorder %s18, 0
      %p57 = por %p55, %p56
      %p58 = scmp.ne.s32.totalorder %s47, %s50
      %p59 = scmp.eq.s32.totalorder %s23, 1
      %p60 = por %p58, %p59
      %p61 = scmp.ne.s32.totalorder %s50, %s51
      %p62 = scmp.eq.s32.totalorder %s23, 0
      %p63 = por %p61, %p62
      %p64 = scmp.ne.s32.totalorder %s50, %s51
      %p65 = scmp.eq.s32.totalorder %s24, 1
      %p66 = por %p64, %p65
      %p68 = scmp.ne.s32.totalorder %s51, %s67
      %p69 = scmp.eq.s32.totalorder %s24, 0
      %p70 = por %p68, %p69
      %s71 = ssub.s32 %s27, %s36
      %p72 = scmp.eq.s32.totalorder %s71, 0
      %s74 = sadd.s32 %s73, 1
      %s75 = scalar_select %p72, %s73, %s74
      %p78 = pneg %p72
      %p79 = scmp.eq.s32.totalorder %s18, 1
      %p80 = por %p78, %p79
      %p81 = scmp.ne.s32.totalorder %s73, %s76
      %p82 = scmp.eq.s32.totalorder %s18, 0
      %p83 = por %p81, %p82
      %p84 = scmp.ne.s32.totalorder %s73, %s76
      %p85 = scmp.eq.s32.totalorder %s23, 1
      %p86 = por %p84, %p85
      %p87 = scmp.ne.s32.totalorder %s76, %s77
      %p88 = scmp.eq.s32.totalorder %s23, 0
      %p89 = por %p87, %p88
      %p90 = scmp.ne.s32.totalorder %s76, %s77
      %p91 = scmp.eq.s32.totalorder %s24, 1
      %p92 = por %p90, %p91
      %p94 = scmp.ne.s32.totalorder %s77, %s93
      %p95 = scmp.eq.s32.totalorder %s24, 0
      %p96 = por %p94, %p95
      %s97 = ssub.s32 %s27, %s36
      %p98 = scmp.eq.s32.totalorder %s97, 0
      %s100 = sadd.s32 %s99, 1
      %s101 = scalar_select %p98, %s99, %s100
      %p104 = pneg %p98
      %p105 = scmp.eq.s32.totalorder %s18, 1
      %p106 = por %p104, %p105
      %p107 = scmp.ne.s32.totalorder %s99, %s102
      %p108 = scmp.eq.s32.totalorder %s18, 0
      %p109 = por %p107, %p108
      %p110 = scmp.ne.s32.totalorder %s99, %s102
      %p111 = scmp.eq.s32.totalorder %s23, 1
      %p112 = por %p110, %p111
      %p113 = scmp.ne.s32.totalorder %s102, %s103
      %p114 = scmp.eq.s32.totalorder %s23, 0
      %p115 = por %p113, %p114
      %p116 = scmp.ne.s32.totalorder %s102, %s103
      %p117 = scmp.eq.s32.totalorder %s24, 1
      %p118 = por %p116, %p117
      %p120 = scmp.ne.s32.totalorder %s103, %s119
      %p121 = scmp.eq.s32.totalorder %s24, 0
      %p122 = por %p120, %p121
      %s123 = ssub.s32 %s27, %s36
      %p124 = scmp.eq.s32.totalorder %s123, 0
      %s126 = sadd.s32 %s125, 1
      %s127 = scalar_select %p124, %s125, %s126
      %p130 = pneg %p124
      %p131 = scmp.eq.s32.totalorder %s18, 1
      %p132 = por %p130, %p131
      %p133 = scmp.ne.s32.totalorder %s125, %s128
      %p134 = scmp.eq.s32.totalorder %s18, 0
      %p135 = por %p133, %p134
      %p136 = scmp.ne.s32.totalorder %s125, %s128
      %p137 = scmp.eq.s32.totalorder %s23, 1
      %p138 = por %p136, %p137
      %p139 = scmp.ne.s32.totalorder %s128, %s129
      %p140 = scmp.eq.s32.totalorder %s23, 0
      %p141 = por %p139, %p140
      %p142 = scmp.ne.s32.totalorder %s128, %s129
      %p143 = scmp.eq.s32.totalorder %s24, 1
      %p144 = por %p142, %p143
      %p146 = scmp.ne.s32.totalorder %s129, %s145
      %p147 = scmp.eq.s32.totalorder %s24, 0
      %p148 = por %p146, %p147
      %s149 = ssub.s32 %s25, %s44
      %s150 = ssub.s32 %s26, %s40
      %s151 = sor.u32 %s149, %s150
      %p152 = scmp.eq.s32.totalorder %s151, 0
      %s154 = sadd.s32 %s153, 1
      %s155 = scalar_select %p152, %s153, %s154
      %p158 = pneg %p152
      %p159 = scmp.eq.s32.totalorder %s18, 1
      %p160 = por %p158, %p159
      %p161 = scmp.ne.s32.totalorder %s153, %s156
      %p162 = scmp.eq.s32.totalorder %s18, 0
      %p163 = por %p161, %p162
      %p164 = scmp.ne.s32.totalorder %s153, %s156
      %p165 = scmp.eq.s32.totalorder %s23, 1
      %p166 = por %p164, %p165
      %p167 = scmp.ne.s32.totalorder %s156, %s157
      %p168 = scmp.eq.s32.totalorder %s23, 0
      %p169 = por %p167, %p168
      %p170 = scmp.ne.s32.totalorder %s156, %s157
      %p171 = scmp.eq.s32.totalorder %s24, 1
      %p172 = por %p170, %p171
      %p174 = scmp.ne.s32.totalorder %s157, %s173
      %p175 = scmp.eq.s32.totalorder %s24, 0
      %p176 = por %p174, %p175
      %p177 = scmp.le.s32.totalorder 1, %s18
      %p178 = scmp.lt.s32.totalorder %s18, 3
      %p179 = pnand %p177, %p178
      %p180 = pneg %p179
      // Predicated region
      $region9: #{tpu_custom_call.1} parent=5 // pred_check
        _
      $region10: #{tpu_custom_call.1} parent=5 // pred_check_branch
        %182 = sbr.rel (%p179) target = $region12
      $region11: #{tpu_custom_call.1} parent=5 // pred_region
        %s183 = ssub.s32 %s18, 1
        // Predicated region
        $region13: #{tpu_custom_call.1} parent=11 // pred_check
          %p184 = pneg %p89
        $region14: #{tpu_custom_call.1} parent=11 // pred_check_branch
          %186 = sbr.rel (%p184) target = $region16
        $region15: #{tpu_custom_call.1} parent=11 // pred_region
          %s188 = ssub.s32 1152, 1152
          %189 = vsyncadd [#allocation6], %s188
          %s190 = smul.addr %s30, 64
          %s191 = scalar_lea.hbm %s1, %s190
          %s192 = sshll.u32 [#allocation5], 4
          %s193 = int_to_ptr.vmem [resolvable:$true] %s192
          %198 = dma.hbm_to_vmem [thread:$0]  %s191, 1152, %s193, [#allocation6], 64, 64, 4
        $region16: #{tpu_custom_call.1} parent=11 // pred_fallthru
          _
        // Predicated region
        $region17: #{tpu_custom_call.1} parent=11 // pred_check
          %p199 = pneg %p115
        $region18: #{tpu_custom_call.1} parent=11 // pred_check_branch
          %201 = sbr.rel (%p199) target = $region20
        $region19: #{tpu_custom_call.1} parent=11 // pred_region
          %s203 = ssub.s32 16, 16
          %204 = vsyncadd [#allocation6], %s203
          %s205 = smul.addr %s30, 16
          %s206 = scalar_lea.hbm %s2, %s205
          %s208 = sshll.u32 [#allocation7], 4
          %s209 = int_to_ptr.vmem [resolvable:$true] %s208
          %211 = dma.hbm_to_vmem [thread:$0]  %s206, 16, %s209, [#allocation6]
        $region20: #{tpu_custom_call.1} parent=11 // pred_fallthru
          _
        // Predicated region
        $region21: #{tpu_custom_call.1} parent=11 // pred_check
          %p212 = pneg %p141
        $region22: #{tpu_custom_call.1} parent=11 // pred_check_branch
          %214 = sbr.rel (%p212) target = $region24
        $region23: #{tpu_custom_call.1} parent=11 // pred_region
          %s216 = ssub.s32 16, 16
          %217 = vsyncadd [#allocation9], %s216
          %s218 = smul.addr %s30, 16
          %s219 = scalar_lea.hbm %s3, %s218
          %s221 = sshll.u32 [#allocation8], 4
          %s222 = int_to_ptr.vmem [resolvable:$true] %s221
          %224 = dma.hbm_to_vmem [thread:$0]  %s219, 16, %s222, [#allocation9]
        $region24: #{tpu_custom_call.1} parent=11 // pred_fallthru
          _
      $region12: #{tpu_custom_call.1} parent=5 // pred_fallthru
        _
      %p225 = scmp.lt.s32.totalorder %s18, 2
      // Predicated region
      $region25: #{tpu_custom_call.1} parent=5 // pred_check
        %p226 = pneg %p225
      $region26: #{tpu_custom_call.1} parent=5 // pred_check_branch
        %228 = sbr.rel (%p226) target = $region28
      $region27: #{tpu_custom_call.1} parent=5 // pred_region
        // Predicated region
        $region29: #{tpu_custom_call.1} parent=27 // pred_check
          %p229 = pneg %p57
        $region30: #{tpu_custom_call.1} parent=27 // pred_check_branch
          %231 = sbr.rel (%p229) target = $region32
        $region31: #{tpu_custom_call.1} parent=27 // pred_region
          %s232 = sand.u32 %s47, 1
          %s233 = scalar_lea.sflag [#allocation3], %s232
          %s234 = sand.u32 %s47, 1
          %s235 = smul.addr %s234, 228
          %s236 = scalar_lea.vmem [#allocation2], %s235
          %s238 = ssub.s32 3648, 3648
          %239 = vsyncadd %s233, %s238
          %s240 = smul.addr %s25, 57
          %s241 = smul.addr %s240, 64
          %s242 = scalar_lea.hbm %s0, %s241
          %s243 = sshll.u32 %s236, 4
          %s244 = int_to_ptr.vmem [resolvable:$true] %s243
          %249 = dma.hbm_to_vmem [thread:$0]  %s242, 3648, %s244, %s233, 64, 64, 4
        $region32: #{tpu_custom_call.1} parent=27 // pred_fallthru
          _
      $region28: #{tpu_custom_call.1} parent=5 // pred_fallthru
        _
      %p250 = scmp.le.s32.totalorder 1, %s18
      %p251 = scmp.lt.s32.totalorder %s18, 3
      %p252 = pnand %p250, %p251
      %p253 = pneg %p252
      // Predicated region
      $region33: #{tpu_custom_call.1} parent=5 // pred_check
        _
      $region34: #{tpu_custom_call.1} parent=5 // pred_check_branch
        %255 = sbr.rel (%p252) target = $region36
      $region35: #{tpu_custom_call.1} parent=5 // pred_region
        %s256 = ssub.s32 %s18, 1
        %s257 = sand.u32 %s50, 1
        %s258 = scalar_lea.sflag [#allocation3], %s257
        %s259 = sand.u32 %s50, 1
        %s260 = smul.addr %s259, 228
        %s261 = scalar_lea.vmem [#allocation2], %s260
        // Predicated region
        $region37: #{tpu_custom_call.1} parent=35 // pred_check
          %p262 = pneg %p63
        $region38: #{tpu_custom_call.1} parent=35 // pred_check_branch
          %264 = sbr.rel (%p262) target = $region40
        $region39: #{tpu_custom_call.1} parent=35 // pred_region
          %265 = dma.done %s258, 3648
        $region40: #{tpu_custom_call.1} parent=35 // pred_fallthru
          _
        // Predicated region
        $region41: #{tpu_custom_call.1} parent=35 // pred_check
          %p266 = pneg %p89
        $region42: #{tpu_custom_call.1} parent=35 // pred_check_branch
          %268 = sbr.rel (%p266) target = $region44
        $region43: #{tpu_custom_call.1} parent=35 // pred_region
          %269 = dma.done [#allocation6], 1152
        $region44: #{tpu_custom_call.1} parent=35 // pred_fallthru
          _
        // Predicated region
        $region45: #{tpu_custom_call.1} parent=35 // pred_check
          %p270 = pneg %p115
        $region46: #{tpu_custom_call.1} parent=35 // pred_check_branch
          %272 = sbr.rel (%p270) target = $region48
        $region47: #{tpu_custom_call.1} parent=35 // pred_region
          %273 = dma.done [#allocation6], 16
        $region48: #{tpu_custom_call.1} parent=35 // pred_fallthru
          _
        // Predicated region
        $region49: #{tpu_custom_call.1} parent=35 // pred_check
          %p274 = pneg %p141
        $region50: #{tpu_custom_call.1} parent=35 // pred_check_branch
          %276 = sbr.rel (%p274) target = $region52
        $region51: #{tpu_custom_call.1} parent=35 // pred_region
          %277 = dma.done [#allocation9], 16
        $region52: #{tpu_custom_call.1} parent=35 // pred_fallthru
          _
        %s278 = sand.u32 %s50, 1
        %s279 = scalar_lea.sflag [#allocation3], %s278
        %s280 = sand.u32 %s50, 1
        %s281 = smul.addr %s280, 228
        %s282 = scalar_lea.vmem [#allocation2], %s281
        %p283 = pneg %p63
        %p284 = pneg %p60
        %p285 = pneg %p89
        %p286 = pneg %p86
        %p287 = pneg %p115
        %p288 = pneg %p112
        %p289 = pneg %p141
        %p290 = pneg %p138
        %p291 = pneg %p169
        %p292 = pneg %p166
        %s293 = sand.u32 %s156, 1
        %s294 = scalar_lea.sflag [#allocation4], %s293
        %s295 = sand.u32 %s156, 1
        %s296 = smul.addr %s295, 64
        %s297 = scalar_lea.vmem [#allocation10], %s296
        %s298 = smul.u32 2, %s29
        %v300 = vld [vmem:[%s261] sm:$0xf]
        %v301 = vld [vmem:[%s261 + $0x4] sm:$0xf]
        %v302 = vld [vmem:[%s261 + $0x8] sm:$0xf]
        %v303 = vld [vmem:[%s261 + $0xc] sm:$0xf]
        %v304 = vld [vmem:[%s261 + $0x10] sm:$0xf]
        %v305 = vld [vmem:[%s261 + $0x14] sm:$0xf]
        %v306 = vld [vmem:[%s261 + $0x18] sm:$0xf]
        %v307 = vld [vmem:[%s261 + $0x1c] sm:$0xf]
        %v308 = vld [vmem:[%s261 + $0x20] sm:$0xf]
        %v309 = vld [vmem:[%s261 + $0x24] sm:$0xf]
        %v310 = vld [vmem:[%s261 + $0x28] sm:$0xf]
        %v311 = vld [vmem:[%s261 + $0x2c] sm:$0xf]
        %v312 = vld [vmem:[%s261 + $0x30] sm:$0xf]
        %v313 = vld [vmem:[%s261 + $0x34] sm:$0xf]
        %v314 = vld [vmem:[%s261 + $0x38] sm:$0xf]
        %v315 = vld [vmem:[%s261 + $0x3c] sm:$0xf]
        %v316 = vld [vmem:[%s261 + $0x40] sm:$0xf]
        %v317 = vld [vmem:[%s261 + $0x44] sm:$0xf]
        %v318 = vld [vmem:[%s261 + $0x48] sm:$0xf]
        %v319 = vld [vmem:[%s261 + $0x4c] sm:$0xf]
        %v320 = vld [vmem:[%s261 + $0x50] sm:$0xf]
        %v321 = vld [vmem:[%s261 + $0x54] sm:$0xf]
        %v322 = vld [vmem:[%s261 + $0x58] sm:$0xf]
        %v323 = vld [vmem:[%s261 + $0x5c] sm:$0xf]
        %v324 = vld [vmem:[%s261 + $0x60] sm:$0xf]
        %v325 = vld [vmem:[%s261 + $0x64] sm:$0xf]
        %v326 = vld [vmem:[%s261 + $0x68] sm:$0xf]
        %v327 = vld [vmem:[%s261 + $0x6c] sm:$0xf]
        %v328 = vld [vmem:[%s261 + $0x70] sm:$0xf]
        %v329 = vld [vmem:[%s261 + $0x74] sm:$0xf]
        %v330 = vld [vmem:[%s261 + $0x78] sm:$0xf]
        %v331 = vld [vmem:[%s261 + $0x7c] sm:$0xf]
        %v332 = vld [vmem:[%s261 + $0x80] sm:$0xf]
        %v333 = vld [vmem:[%s261 + $0x84] sm:$0xf]
        %v334 = vld [vmem:[%s261 + $0x88] sm:$0xf]
        %v335 = vld [vmem:[%s261 + $0x8c] sm:$0xf]
        %v336 = vld [vmem:[%s261 + $0x90] sm:$0xf]
        %v337 = vld [vmem:[%s261 + $0x94] sm:$0xf]
        %v338 = vld [vmem:[%s261 + $0x98] sm:$0xf]
        %v339 = vld [vmem:[%s261 + $0x9c] sm:$0xf]
        %v340 = vld [vmem:[%s261 + $0xa0] sm:$0xf]
        %v341 = vld [vmem:[%s261 + $0xa4] sm:$0xf]
        %v342 = vld [vmem:[%s261 + $0xa8] sm:$0xf]
        %v343 = vld [vmem:[%s261 + $0xac] sm:$0xf]
        %v344 = vld [vmem:[%s261 + $0xb0] sm:$0xf]
        %v345 = vld [vmem:[%s261 + $0xb4] sm:$0xf]
        %v346 = vld [vmem:[%s261 + $0xb8] sm:$0xf]
        %v347 = vld [vmem:[%s261 + $0xbc] sm:$0xf]
        %v348 = vld [vmem:[%s261 + $0xc0] sm:$0xf]
        %v349 = vld [vmem:[%s261 + $0xc4] sm:$0xf]
        %v350 = vld [vmem:[%s261 + $0xc8] sm:$0xf]
        %v351 = vld [vmem:[%s261 + $0xcc] sm:$0xf]
        %v352 = vld [vmem:[%s261 + $0xd0] sm:$0xf]
        %v353 = vld [vmem:[%s261 + $0xd4] sm:$0xf]
        %v354 = vld [vmem:[%s261 + $0xd8] sm:$0xf]
        %v355 = vld [vmem:[%s261 + $0xdc] sm:$0xf]
        %v406 = vunpack.c.l.b16 %v300
        %v407 = vunpack.c.l.b16 %v301
        %v408 = vunpack.c.l.b16 %v302
        %v409 = vunpack.c.l.b16 %v303
        %v410 = vunpack.c.l.b16 %v304
        %v411 = vunpack.c.l.b16 %v305
        %v412 = vunpack.c.l.b16 %v306
        %v413 = vunpack.c.l.b16 %v307
        %v414 = vunpack.c.l.b16 %v308
        %v415 = vunpack.c.l.b16 %v309
        %v416 = vunpack.c.l.b16 %v310
        %v417 = vunpack.c.l.b16 %v311
        %v418 = vunpack.c.l.b16 %v312
        %v419 = vunpack.c.l.b16 %v313
        %v420 = vunpack.c.l.b16 %v314
        %v421 = vunpack.c.l.b16 %v315
        %v422 = vunpack.c.l.b16 %v316
        %v423 = vunpack.c.l.b16 %v317
        %v424 = vunpack.c.l.b16 %v318
        %v425 = vunpack.c.l.b16 %v319
        %v426 = vunpack.c.l.b16 %v320
        %v427 = vunpack.c.l.b16 %v321
        %v428 = vunpack.c.l.b16 %v322
        %v429 = vunpack.c.l.b16 %v323
        %v430 = vunpack.c.l.b16 %v324
        %v431 = vunpack.c.l.b16 %v325
        %v432 = vunpack.c.l.b16 %v326
        %v433 = vunpack.c.l.b16 %v327
        %v434 = vunpack.c.l.b16 %v328
        %v435 = vunpack.c.l.b16 %v329
        %v436 = vunpack.c.l.b16 %v330
        %v437 = vunpack.c.l.b16 %v331
        %v438 = vunpack.c.l.b16 %v332
        %v439 = vunpack.c.l.b16 %v333
        %v440 = vunpack.c.l.b16 %v334
        %v441 = vunpack.c.l.b16 %v335
        %v442 = vunpack.c.l.b16 %v336
        %v443 = vunpack.c.l.b16 %v337
        %v444 = vunpack.c.l.b16 %v338
        %v445 = vunpack.c.l.b16 %v339
        %v446 = vunpack.c.l.b16 %v340
        %v447 = vunpack.c.l.b16 %v341
        %v448 = vunpack.c.l.b16 %v342
        %v449 = vunpack.c.l.b16 %v343
        %v450 = vunpack.c.l.b16 %v344
        %v451 = vunpack.c.l.b16 %v345
        %v452 = vunpack.c.l.b16 %v346
        %v453 = vunpack.c.l.b16 %v347
        %v454 = vunpack.c.l.b16 %v348
        %v455 = vunpack.c.l.b16 %v349
        %v456 = vpack.c.b16 %v407, %v406
        %v457 = vpack.c.b16 %v408, %v408
        %v458 = vpack.c.b16 %v410, %v409
        %v459 = vpack.c.b16 %v411, %v411
        %v460 = vpack.c.b16 %v413, %v412
        %v461 = vpack.c.b16 %v414, %v414
        %v462 = vpack.c.b16 %v416, %v415
        %v463 = vpack.c.b16 %v417, %v417
        %v464 = vpack.c.b16 %v419, %v418
        %v465 = vpack.c.b16 %v420, %v420
        %v466 = vpack.c.b16 %v422, %v421
        %v467 = vpack.c.b16 %v423, %v423
        %v468 = vpack.c.b16 %v425, %v424
        %v469 = vpack.c.b16 %v426, %v426
        %v470 = vpack.c.b16 %v428, %v427
        %v471 = vpack.c.b16 %v429, %v429
        %v472 = vpack.c.b16 %v431, %v430
        %v473 = vpack.c.b16 %v432, %v432
        %v474 = vpack.c.b16 %v434, %v433
        %v475 = vpack.c.b16 %v435, %v435
        %v476 = vpack.c.b16 %v437, %v436
        %v477 = vpack.c.b16 %v438, %v438
        %v478 = vpack.c.b16 %v440, %v439
        %v479 = vpack.c.b16 %v441, %v441
        %v480 = vpack.c.b16 %v443, %v442
        %v481 = vpack.c.b16 %v444, %v444
        %v482 = vpack.c.b16 %v446, %v445
        %v483 = vpack.c.b16 %v447, %v447
        %v484 = vpack.c.b16 %v449, %v448
        %v485 = vpack.c.b16 %v450, %v450
        %v486 = vpack.c.b16 %v452, %v451
        %v487 = vpack.c.b16 %v453, %v453
        %v488 = vpack.c.b16 %v455, %v454
        %v492 = vunpack.c.l.b16 %v350
        %v493 = vunpack.c.l.b16 %v351
        %v494 = vunpack.c.l.b16 %v352
        %v495 = vpack.c.b16 %v492, %v492
        %v496 = vpack.c.b16 %v494, %v493
        %497 = vrot.lane.b32.xlu0 %v458, 16
        %v498 = vpop.permute.xlu0 %497
        %499 = vrot.lane.b32.xlu0 %v459, 16
        %v500 = vpop.permute.xlu0 %499
        %501 = vrot.lane.b32.xlu0 %v460, 16
        %v502 = vpop.permute.xlu0 %501
        %503 = vrot.lane.b32.xlu0 %v461, 16
        %v504 = vpop.permute.xlu0 %503
        %505 = vrot.lane.b32.xlu0 %v462, 16
        %v506 = vpop.permute.xlu0 %505
        %507 = vrot.lane.b32.xlu0 %v463, 16
        %v508 = vpop.permute.xlu0 %507
        %509 = vrot.lane.b32.xlu0 %v464, 16
        %v510 = vpop.permute.xlu0 %509
        %511 = vrot.lane.b32.xlu0 %v465, 16
        %v512 = vpop.permute.xlu0 %511
        %513 = vrot.lane.b32.xlu0 %v466, 16
        %v514 = vpop.permute.xlu0 %513
        %515 = vrot.lane.b32.xlu0 %v467, 16
        %v516 = vpop.permute.xlu0 %515
        %517 = vrot.lane.b32.xlu0 %v468, 16
        %v518 = vpop.permute.xlu0 %517
        %519 = vrot.lane.b32.xlu0 %v469, 16
        %v520 = vpop.permute.xlu0 %519
        %521 = vrot.lane.b32.xlu0 %v470, 16
        %v522 = vpop.permute.xlu0 %521
        %523 = vrot.lane.b32.xlu0 %v471, 16
        %v524 = vpop.permute.xlu0 %523
        %525 = vrot.lane.b32.xlu0 %v472, 16
        %v526 = vpop.permute.xlu0 %525
        %527 = vrot.lane.b32.xlu0 %v473, 16
        %v528 = vpop.permute.xlu0 %527
        %529 = vrot.lane.b32.xlu0 %v474, 16
        %v530 = vpop.permute.xlu0 %529
        %531 = vrot.lane.b32.xlu0 %v475, 16
        %v532 = vpop.permute.xlu0 %531
        %533 = vrot.lane.b32.xlu0 %v476, 16
        %v534 = vpop.permute.xlu0 %533
        %535 = vrot.lane.b32.xlu0 %v477, 16
        %v536 = vpop.permute.xlu0 %535
        %537 = vrot.lane.b32.xlu0 %v478, 16
        %v538 = vpop.permute.xlu0 %537
        %539 = vrot.lane.b32.xlu0 %v479, 16
        %v540 = vpop.permute.xlu0 %539
        %541 = vrot.lane.b32.xlu0 %v480, 16
        %v542 = vpop.permute.xlu0 %541
        %543 = vrot.lane.b32.xlu0 %v481, 16
        %v544 = vpop.permute.xlu0 %543
        %545 = vrot.lane.b32.xlu0 %v482, 16
        %v546 = vpop.permute.xlu0 %545
        %547 = vrot.lane.b32.xlu0 %v483, 16
        %v548 = vpop.permute.xlu0 %547
        %549 = vrot.lane.b32.xlu0 %v484, 16
        %v550 = vpop.permute.xlu0 %549
        %551 = vrot.lane.b32.xlu0 %v485, 16
        %v552 = vpop.permute.xlu0 %551
        %553 = vrot.lane.b32.xlu0 %v486, 16
        %v554 = vpop.permute.xlu0 %553
        %555 = vrot.lane.b32.xlu0 %v487, 16
        %v556 = vpop.permute.xlu0 %555
        %557 = vrot.lane.b32.xlu0 %v488, 16
        %v558 = vpop.permute.xlu0 %557
        %559 = vrot.lane.b32.xlu0 %v495, 16
        %v560 = vpop.permute.xlu0 %559
        %561 = vrot.lane.b32.xlu0 %v496, 16
        %v562 = vpop.permute.xlu0 %561
        %v566 = vunpack.c.l.b16 %v353
        %v567 = vunpack.c.l.b16 %v354
        %v568 = vunpack.c.l.b16 %v355
        %v569 = vpack.c.b16 %v566, %v566
        %v570 = vpack.c.b16 %v568, %v567
        %571 = vrot.lane.b32.xlu0 %v460, 32
        %v572 = vpop.permute.xlu0 %571
        %573 = vrot.lane.b32.xlu0 %v461, 32
        %v574 = vpop.permute.xlu0 %573
        %575 = vrot.lane.b32.xlu0 %v462, 32
        %v576 = vpop.permute.xlu0 %575
        %577 = vrot.lane.b32.xlu0 %v463, 32
        %v578 = vpop.permute.xlu0 %577
        %579 = vrot.lane.b32.xlu0 %v464, 32
        %v580 = vpop.permute.xlu0 %579
        %581 = vrot.lane.b32.xlu0 %v465, 32
        %v582 = vpop.permute.xlu0 %581
        %583 = vrot.lane.b32.xlu0 %v466, 32
        %v584 = vpop.permute.xlu0 %583
        %585 = vrot.lane.b32.xlu0 %v467, 32
        %v586 = vpop.permute.xlu0 %585
        %587 = vrot.lane.b32.xlu0 %v468, 32
        %v588 = vpop.permute.xlu0 %587
        %589 = vrot.lane.b32.xlu0 %v469, 32
        %v590 = vpop.permute.xlu0 %589
        %591 = vrot.lane.b32.xlu0 %v470, 32
        %v592 = vpop.permute.xlu0 %591
        %593 = vrot.lane.b32.xlu0 %v471, 32
        %v594 = vpop.permute.xlu0 %593
        %595 = vrot.lane.b32.xlu0 %v472, 32
        %v596 = vpop.permute.xlu0 %595
        %597 = vrot.lane.b32.xlu0 %v473, 32
        %v598 = vpop.permute.xlu0 %597
        %599 = vrot.lane.b32.xlu0 %v474, 32
        %v600 = vpop.permute.xlu0 %599
        %601 = vrot.lane.b32.xlu0 %v475, 32
        %v602 = vpop.permute.xlu0 %601
        %603 = vrot.lane.b32.xlu0 %v476, 32
        %v604 = vpop.permute.xlu0 %603
        %605 = vrot.lane.b32.xlu0 %v477, 32
        %v606 = vpop.permute.xlu0 %605
        %607 = vrot.lane.b32.xlu0 %v478, 32
        %v608 = vpop.permute.xlu0 %607
        %609 = vrot.lane.b32.xlu0 %v479, 32
        %v610 = vpop.permute.xlu0 %609
        %611 = vrot.lane.b32.xlu0 %v480, 32
        %v612 = vpop.permute.xlu0 %611
        %613 = vrot.lane.b32.xlu0 %v481, 32
        %v614 = vpop.permute.xlu0 %613
        %615 = vrot.lane.b32.xlu0 %v482, 32
        %v616 = vpop.permute.xlu0 %615
        %617 = vrot.lane.b32.xlu0 %v483, 32
        %v618 = vpop.permute.xlu0 %617
        %619 = vrot.lane.b32.xlu0 %v484, 32
        %v620 = vpop.permute.xlu0 %619
        %621 = vrot.lane.b32.xlu0 %v485, 32
        %v622 = vpop.permute.xlu0 %621
        %623 = vrot.lane.b32.xlu0 %v486, 32
        %v624 = vpop.permute.xlu0 %623
        %625 = vrot.lane.b32.xlu0 %v487, 32
        %v626 = vpop.permute.xlu0 %625
        %627 = vrot.lane.b32.xlu0 %v488, 32
        %v628 = vpop.permute.xlu0 %627
        %629 = vrot.lane.b32.xlu0 %v495, 32
        %v630 = vpop.permute.xlu0 %629
        %631 = vrot.lane.b32.xlu0 %v496, 32
        %v632 = vpop.permute.xlu0 %631
        %633 = vrot.lane.b32.xlu0 %v569, 32
        %v634 = vpop.permute.xlu0 %633
        %635 = vrot.lane.b32.xlu0 %v570, 32
        %v636 = vpop.permute.xlu0 %635
        %vm637 = vcmask 130048
        %v640 = vsel %vm637, %v456, %v498
        %v643 = vsel %vm637, %v457, %v500
        %v646 = vsel %vm637, %v458, %v502
        %v649 = vsel %vm637, %v459, %v504
        %v652 = vsel %vm637, %v460, %v506
        %v655 = vsel %vm637, %v461, %v508
        %v658 = vsel %vm637, %v462, %v510
        %v661 = vsel %vm637, %v463, %v512
        %v664 = vsel %vm637, %v464, %v514
        %v667 = vsel %vm637, %v465, %v516
        %v670 = vsel %vm637, %v466, %v518
        %v673 = vsel %vm637, %v467, %v520
        %v676 = vsel %vm637, %v468, %v522
        %v679 = vsel %vm637, %v469, %v524
        %v682 = vsel %vm637, %v470, %v526
        %v685 = vsel %vm637, %v471, %v528
        %v688 = vsel %vm637, %v472, %v530
        %v691 = vsel %vm637, %v473, %v532
        %v694 = vsel %vm637, %v474, %v534
        %v697 = vsel %vm637, %v475, %v536
        %v700 = vsel %vm637, %v476, %v538
        %v703 = vsel %vm637, %v477, %v540
        %v706 = vsel %vm637, %v478, %v542
        %v709 = vsel %vm637, %v479, %v544
        %v712 = vsel %vm637, %v480, %v546
        %v715 = vsel %vm637, %v481, %v548
        %v718 = vsel %vm637, %v482, %v550
        %v721 = vsel %vm637, %v483, %v552
        %v724 = vsel %vm637, %v484, %v554
        %v727 = vsel %vm637, %v485, %v556
        %v730 = vsel %vm637, %v486, %v558
        %v733 = vsel %vm637, %v487, %v560
        %v736 = vsel %vm637, %v488, %v562
        %vm737 = vcmask 261120
        %v739 = vsel %vm737, %v640, %v572
        %v741 = vsel %vm737, %v643, %v574
        %v743 = vsel %vm737, %v646, %v576
        %v745 = vsel %vm737, %v649, %v578
        %v747 = vsel %vm737, %v652, %v580
        %v749 = vsel %vm737, %v655, %v582
        %v751 = vsel %vm737, %v658, %v584
        %v753 = vsel %vm737, %v661, %v586
        %v755 = vsel %vm737, %v664, %v588
        %v757 = vsel %vm737, %v667, %v590
        %v759 = vsel %vm737, %v670, %v592
        %v761 = vsel %vm737, %v673, %v594
        %v763 = vsel %vm737, %v676, %v596
        %v765 = vsel %vm737, %v679, %v598
        %v767 = vsel %vm737, %v682, %v600
        %v769 = vsel %vm737, %v685, %v602
        %v771 = vsel %vm737, %v688, %v604
        %v773 = vsel %vm737, %v691, %v606
        %v775 = vsel %vm737, %v694, %v608
        %v777 = vsel %vm737, %v697, %v610
        %v779 = vsel %vm737, %v700, %v612
        %v781 = vsel %vm737, %v703, %v614
        %v783 = vsel %vm737, %v706, %v616
        %v785 = vsel %vm737, %v709, %v618
        %v787 = vsel %vm737, %v712, %v620
        %v789 = vsel %vm737, %v715, %v622
        %v791 = vsel %vm737, %v718, %v624
        %v793 = vsel %vm737, %v721, %v626
        %v795 = vsel %vm737, %v724, %v628
        %v797 = vsel %vm737, %v727, %v630
        %v799 = vsel %vm737, %v730, %v632
        %v801 = vsel %vm737, %v733, %v634
        %v803 = vsel %vm737, %v736, %v636
        %v837 = vunpack.c.l.b16 %v739
        %v838 = vunpack.c.h.b16 %v739
        %v839 = vunpack.c.l.b16 %v741
        %v840 = vunpack.c.l.b16 %v743
        %v841 = vunpack.c.h.b16 %v743
        %v842 = vunpack.c.l.b16 %v745
        %v843 = vunpack.c.l.b16 %v747
        %v844 = vunpack.c.h.b16 %v747
        %v845 = vunpack.c.l.b16 %v749
        %v846 = vunpack.c.l.b16 %v751
        %v847 = vunpack.c.h.b16 %v751
        %v848 = vunpack.c.l.b16 %v753
        %v849 = vunpack.c.l.b16 %v755
        %v850 = vunpack.c.h.b16 %v755
        %v851 = vunpack.c.l.b16 %v757
        %v852 = vunpack.c.l.b16 %v759
        %v853 = vunpack.c.h.b16 %v759
        %v854 = vunpack.c.l.b16 %v761
        %v855 = vunpack.c.l.b16 %v763
        %v856 = vunpack.c.h.b16 %v763
        %v857 = vunpack.c.l.b16 %v765
        %v858 = vunpack.c.l.b16 %v767
        %v859 = vunpack.c.h.b16 %v767
        %v860 = vunpack.c.l.b16 %v769
        %v861 = vunpack.c.l.b16 %v771
        %v862 = vunpack.c.h.b16 %v771
        %v863 = vunpack.c.l.b16 %v773
        %v864 = vunpack.c.l.b16 %v775
        %v865 = vunpack.c.h.b16 %v775
        %v866 = vunpack.c.l.b16 %v777
        %v867 = vunpack.c.l.b16 %v779
        %v868 = vunpack.c.h.b16 %v779
        %v869 = vunpack.c.l.b16 %v781
        %v870 = vunpack.c.l.b16 %v783
        %v871 = vunpack.c.h.b16 %v783
        %v872 = vunpack.c.l.b16 %v785
        %v873 = vunpack.c.l.b16 %v787
        %v874 = vunpack.c.h.b16 %v787
        %v875 = vunpack.c.l.b16 %v789
        %v876 = vunpack.c.l.b16 %v791
        %v877 = vunpack.c.h.b16 %v791
        %v878 = vunpack.c.l.b16 %v793
        %v879 = vunpack.c.l.b16 %v795
        %v880 = vunpack.c.h.b16 %v795
        %v881 = vunpack.c.l.b16 %v797
        %v882 = vunpack.c.l.b16 %v799
        %v883 = vunpack.c.h.b16 %v799
        %v884 = vunpack.c.l.b16 %v801
        %v885 = vunpack.c.l.b16 %v803
        %v886 = vpack.c.b16 %v838, %v837
        %v887 = vpack.c.b16 %v840, %v839
        %v888 = vpack.c.b16 %v842, %v841
        %v889 = vpack.c.b16 %v844, %v843
        %v890 = vpack.c.b16 %v846, %v845
        %v891 = vpack.c.b16 %v848, %v847
        %v892 = vpack.c.b16 %v850, %v849
        %v893 = vpack.c.b16 %v852, %v851
        %v894 = vpack.c.b16 %v854, %v853
        %v895 = vpack.c.b16 %v856, %v855
        %v896 = vpack.c.b16 %v858, %v857
        %v897 = vpack.c.b16 %v860, %v859
        %v898 = vpack.c.b16 %v862, %v861
        %v899 = vpack.c.b16 %v864, %v863
        %v900 = vpack.c.b16 %v866, %v865
        %v901 = vpack.c.b16 %v868, %v867
        %v902 = vpack.c.b16 %v870, %v869
        %v903 = vpack.c.b16 %v872, %v871
        %v904 = vpack.c.b16 %v874, %v873
        %v905 = vpack.c.b16 %v876, %v875
        %v906 = vpack.c.b16 %v878, %v877
        %v907 = vpack.c.b16 %v880, %v879
        %v908 = vpack.c.b16 %v882, %v881
        %v909 = vpack.c.b16 %v884, %v883
        %v910 = vpack.c.b16 %v885, %v885
        %vm911 = vsmask.f32 7424
        %v913 = vshrl.u32 %v886, 16
        %v915 = vshll.u32 %v886, 16
        %v917 = vrot.slane %v915, 1
        %v918 = vor.u32 %v913, %v917
        %v920 = vshll.u32 %v887, 16
        %v922 = vrot.slane %v920, 1
        %v923 = vsel %vm911, %v918, %v922
        %v924 = vshrl.u32 %v887, 16
        %v926 = vor.u32 %v924, %v922
        %v928 = vshll.u32 %v888, 16
        %v930 = vrot.slane %v928, 1
        %v931 = vsel %vm911, %v926, %v930
        %v932 = vshrl.u32 %v888, 16
        %v934 = vor.u32 %v932, %v930
        %v936 = vshll.u32 %v889, 16
        %v938 = vrot.slane %v936, 1
        %v939 = vsel %vm911, %v934, %v938
        %v940 = vshrl.u32 %v889, 16
        %v942 = vor.u32 %v940, %v938
        %v944 = vshll.u32 %v890, 16
        %v946 = vrot.slane %v944, 1
        %v947 = vsel %vm911, %v942, %v946
        %v948 = vshrl.u32 %v890, 16
        %v950 = vor.u32 %v948, %v946
        %v952 = vshll.u32 %v891, 16
        %v954 = vrot.slane %v952, 1
        %v955 = vsel %vm911, %v950, %v954
        %v956 = vshrl.u32 %v891, 16
        %v958 = vor.u32 %v956, %v954
        %v960 = vshll.u32 %v892, 16
        %v962 = vrot.slane %v960, 1
        %v963 = vsel %vm911, %v958, %v962
        %v964 = vshrl.u32 %v892, 16
        %v966 = vor.u32 %v964, %v962
        %v968 = vshll.u32 %v893, 16
        %v970 = vrot.slane %v968, 1
        %v971 = vsel %vm911, %v966, %v970
        %v972 = vshrl.u32 %v893, 16
        %v974 = vor.u32 %v972, %v970
        %v976 = vshll.u32 %v894, 16
        %v978 = vrot.slane %v976, 1
        %v979 = vsel %vm911, %v974, %v978
        %v980 = vshrl.u32 %v894, 16
        %v982 = vor.u32 %v980, %v978
        %v984 = vshll.u32 %v895, 16
        %v986 = vrot.slane %v984, 1
        %v987 = vsel %vm911, %v982, %v986
        %v988 = vshrl.u32 %v895, 16
        %v990 = vor.u32 %v988, %v986
        %v992 = vshll.u32 %v896, 16
        %v994 = vrot.slane %v992, 1
        %v995 = vsel %vm911, %v990, %v994
        %v996 = vshrl.u32 %v896, 16
        %v998 = vor.u32 %v996, %v994
        %v1000 = vshll.u32 %v897, 16
        %v1002 = vrot.slane %v1000, 1
        %v1003 = vsel %vm911, %v998, %v1002
        %v1004 = vshrl.u32 %v897, 16
        %v1006 = vor.u32 %v1004, %v1002
        %v1008 = vshll.u32 %v898, 16
        %v1010 = vrot.slane %v1008, 1
        %v1011 = vsel %vm911, %v1006, %v1010
        %v1012 = vshrl.u32 %v898, 16
        %v1014 = vor.u32 %v1012, %v1010
        %v1016 = vshll.u32 %v899, 16
        %v1018 = vrot.slane %v1016, 1
        %v1019 = vsel %vm911, %v1014, %v1018
        %v1020 = vshrl.u32 %v899, 16
        %v1022 = vor.u32 %v1020, %v1018
        %v1024 = vshll.u32 %v900, 16
        %v1026 = vrot.slane %v1024, 1
        %v1027 = vsel %vm911, %v1022, %v1026
        %v1028 = vshrl.u32 %v900, 16
        %v1030 = vor.u32 %v1028, %v1026
        %v1032 = vshll.u32 %v901, 16
        %v1034 = vrot.slane %v1032, 1
        %v1035 = vsel %vm911, %v1030, %v1034
        %v1036 = vshrl.u32 %v901, 16
        %v1038 = vor.u32 %v1036, %v1034
        %v1040 = vshll.u32 %v902, 16
        %v1042 = vrot.slane %v1040, 1
        %v1043 = vsel %vm911, %v1038, %v1042
        %v1044 = vshrl.u32 %v902, 16
        %v1046 = vor.u32 %v1044, %v1042
        %v1048 = vshll.u32 %v903, 16
        %v1050 = vrot.slane %v1048, 1
        %v1051 = vsel %vm911, %v1046, %v1050
        %v1052 = vshrl.u32 %v903, 16
        %v1054 = vor.u32 %v1052, %v1050
        %v1056 = vshll.u32 %v904, 16
        %v1058 = vrot.slane %v1056, 1
        %v1059 = vsel %vm911, %v1054, %v1058
        %v1060 = vshrl.u32 %v904, 16
        %v1062 = vor.u32 %v1060, %v1058
        %v1064 = vshll.u32 %v905, 16
        %v1066 = vrot.slane %v1064, 1
        %v1067 = vsel %vm911, %v1062, %v1066
        %v1068 = vshrl.u32 %v905, 16
        %v1070 = vor.u32 %v1068, %v1066
        %v1072 = vshll.u32 %v906, 16
        %v1074 = vrot.slane %v1072, 1
        %v1075 = vsel %vm911, %v1070, %v1074
        %v1076 = vshrl.u32 %v906, 16
        %v1078 = vor.u32 %v1076, %v1074
        %v1080 = vshll.u32 %v907, 16
        %v1082 = vrot.slane %v1080, 1
        %v1083 = vsel %vm911, %v1078, %v1082
        %v1084 = vshrl.u32 %v907, 16
        %v1086 = vor.u32 %v1084, %v1082
        %v1088 = vshll.u32 %v908, 16
        %v1090 = vrot.slane %v1088, 1
        %v1091 = vsel %vm911, %v1086, %v1090
        %v1092 = vshrl.u32 %v908, 16
        %v1094 = vor.u32 %v1092, %v1090
        %v1096 = vshll.u32 %v909, 16
        %v1098 = vrot.slane %v1096, 1
        %v1099 = vsel %vm911, %v1094, %v1098
        %v1100 = vshrl.u32 %v909, 16
        %v1102 = vor.u32 %v1100, %v1098
        %v1104 = vshll.u32 %v910, 16
        %v1106 = vrot.slane %v1104, 1
        %v1107 = vsel %vm911, %v1102, %v1106
        %1108 = vrot.lane.b32.xlu0 %v923, 48
        %v1109 = vpop.permute.xlu0 %1108
        %1110 = vrot.lane.b32.xlu0 %v931, 48
        %v1111 = vpop.permute.xlu0 %1110
        %1112 = vrot.lane.b32.xlu0 %v939, 48
        %v1113 = vpop.permute.xlu0 %1112
        %1114 = vrot.lane.b32.xlu0 %v947, 48
        %v1115 = vpop.permute.xlu0 %1114
        %1116 = vrot.lane.b32.xlu0 %v955, 48
        %v1117 = vpop.permute.xlu0 %1116
        %1118 = vrot.lane.b32.xlu0 %v963, 48
        %v1119 = vpop.permute.xlu0 %1118
        %1120 = vrot.lane.b32.xlu0 %v971, 48
        %v1121 = vpop.permute.xlu0 %1120
        %1122 = vrot.lane.b32.xlu0 %v979, 48
        %v1123 = vpop.permute.xlu0 %1122
        %1124 = vrot.lane.b32.xlu0 %v987, 48
        %v1125 = vpop.permute.xlu0 %1124
        %1126 = vrot.lane.b32.xlu0 %v995, 48
        %v1127 = vpop.permute.xlu0 %1126
        %1128 = vrot.lane.b32.xlu0 %v1003, 48
        %v1129 = vpop.permute.xlu0 %1128
        %1130 = vrot.lane.b32.xlu0 %v1011, 48
        %v1131 = vpop.permute.xlu0 %1130
        %1132 = vrot.lane.b32.xlu0 %v1019, 48
        %v1133 = vpop.permute.xlu0 %1132
        %1134 = vrot.lane.b32.xlu0 %v1027, 48
        %v1135 = vpop.permute.xlu0 %1134
        %1136 = vrot.lane.b32.xlu0 %v1035, 48
        %v1137 = vpop.permute.xlu0 %1136
        %1138 = vrot.lane.b32.xlu0 %v1043, 48
        %v1139 = vpop.permute.xlu0 %1138
        %1140 = vrot.lane.b32.xlu0 %v1051, 48
        %v1141 = vpop.permute.xlu0 %1140
        %1142 = vrot.lane.b32.xlu0 %v1059, 48
        %v1143 = vpop.permute.xlu0 %1142
        %1144 = vrot.lane.b32.xlu0 %v1067, 48
        %v1145 = vpop.permute.xlu0 %1144
        %1146 = vrot.lane.b32.xlu0 %v1075, 48
        %v1147 = vpop.permute.xlu0 %1146
        %1148 = vrot.lane.b32.xlu0 %v1083, 48
        %v1149 = vpop.permute.xlu0 %1148
        %1150 = vrot.lane.b32.xlu0 %v1091, 48
        %v1151 = vpop.permute.xlu0 %1150
        %1152 = vrot.lane.b32.xlu0 %v1099, 48
        %v1153 = vpop.permute.xlu0 %1152
        %1154 = vrot.lane.b32.xlu0 %v1107, 48
        %v1155 = vpop.permute.xlu0 %1154
        %vm1156 = vcmask 1046528
        %v1157 = vrot.slane %v886, 1
        %v1158 = vrot.slane %v887, 1
        %v1159 = vsel %vm1156, %v1157, %v1158
        %v1160 = vrot.slane %v888, 1
        %v1161 = vsel %vm1156, %v1158, %v1160
        %v1162 = vrot.slane %v889, 1
        %v1163 = vsel %vm1156, %v1160, %v1162
        %v1164 = vrot.slane %v890, 1
        %v1165 = vsel %vm1156, %v1162, %v1164
        %v1166 = vrot.slane %v891, 1
        %v1167 = vsel %vm1156, %v1164, %v1166
        %v1168 = vrot.slane %v892, 1
        %v1169 = vsel %vm1156, %v1166, %v1168
        %v1170 = vrot.slane %v893, 1
        %v1171 = vsel %vm1156, %v1168, %v1170
        %v1172 = vrot.slane %v894, 1
        %v1173 = vsel %vm1156, %v1170, %v1172
        %v1174 = vrot.slane %v895, 1
        %v1175 = vsel %vm1156, %v1172, %v1174
        %v1176 = vrot.slane %v896, 1
        %v1177 = vsel %vm1156, %v1174, %v1176
        %v1178 = vrot.slane %v897, 1
        %v1179 = vsel %vm1156, %v1176, %v1178
        %v1180 = vrot.slane %v898, 1
        %v1181 = vsel %vm1156, %v1178, %v1180
        %v1182 = vrot.slane %v899, 1
        %v1183 = vsel %vm1156, %v1180, %v1182
        %v1184 = vrot.slane %v900, 1
        %v1185 = vsel %vm1156, %v1182, %v1184
        %v1186 = vrot.slane %v901, 1
        %v1187 = vsel %vm1156, %v1184, %v1186
        %v1188 = vrot.slane %v902, 1
        %v1189 = vsel %vm1156, %v1186, %v1188
        %v1190 = vrot.slane %v903, 1
        %v1191 = vsel %vm1156, %v1188, %v1190
        %v1192 = vrot.slane %v904, 1
        %v1193 = vsel %vm1156, %v1190, %v1192
        %v1194 = vrot.slane %v905, 1
        %v1195 = vsel %vm1156, %v1192, %v1194
        %v1196 = vrot.slane %v906, 1
        %v1197 = vsel %vm1156, %v1194, %v1196
        %v1198 = vrot.slane %v907, 1
        %v1199 = vsel %vm1156, %v1196, %v1198
        %v1200 = vrot.slane %v908, 1
        %v1201 = vsel %vm1156, %v1198, %v1200
        %v1202 = vrot.slane %v909, 1
        %v1203 = vsel %vm1156, %v1200, %v1202
        %v1204 = vrot.slane %v910, 1
        %v1205 = vsel %vm1156, %v1202, %v1204
        %1206 = vrot.lane.b32.xlu0 %v1159, 96
        %v1207 = vpop.permute.xlu0 %1206
        %1208 = vrot.lane.b32.xlu0 %v1161, 96
        %v1209 = vpop.permute.xlu0 %1208
        %1210 = vrot.lane.b32.xlu0 %v1163, 96
        %v1211 = vpop.permute.xlu0 %1210
        %1212 = vrot.lane.b32.xlu0 %v1165, 96
        %v1213 = vpop.permute.xlu0 %1212
        %1214 = vrot.lane.b32.xlu0 %v1167, 96
        %v1215 = vpop.permute.xlu0 %1214
        %1216 = vrot.lane.b32.xlu0 %v1169, 96
        %v1217 = vpop.permute.xlu0 %1216
        %1218 = vrot.lane.b32.xlu0 %v1171, 96
        %v1219 = vpop.permute.xlu0 %1218
        %1220 = vrot.lane.b32.xlu0 %v1173, 96
        %v1221 = vpop.permute.xlu0 %1220
        %1222 = vrot.lane.b32.xlu0 %v1175, 96
        %v1223 = vpop.permute.xlu0 %1222
        %1224 = vrot.lane.b32.xlu0 %v1177, 96
        %v1225 = vpop.permute.xlu0 %1224
        %1226 = vrot.lane.b32.xlu0 %v1179, 96
        %v1227 = vpop.permute.xlu0 %1226
        %1228 = vrot.lane.b32.xlu0 %v1181, 96
        %v1229 = vpop.permute.xlu0 %1228
        %1230 = vrot.lane.b32.xlu0 %v1183, 96
        %v1231 = vpop.permute.xlu0 %1230
        %1232 = vrot.lane.b32.xlu0 %v1185, 96
        %v1233 = vpop.permute.xlu0 %1232
        %1234 = vrot.lane.b32.xlu0 %v1187, 96
        %v1235 = vpop.permute.xlu0 %1234
        %1236 = vrot.lane.b32.xlu0 %v1189, 96
        %v1237 = vpop.permute.xlu0 %1236
        %1238 = vrot.lane.b32.xlu0 %v1191, 96
        %v1239 = vpop.permute.xlu0 %1238
        %1240 = vrot.lane.b32.xlu0 %v1193, 96
        %v1241 = vpop.permute.xlu0 %1240
        %1242 = vrot.lane.b32.xlu0 %v1195, 96
        %v1243 = vpop.permute.xlu0 %1242
        %1244 = vrot.lane.b32.xlu0 %v1197, 96
        %v1245 = vpop.permute.xlu0 %1244
        %1246 = vrot.lane.b32.xlu0 %v1199, 96
        %v1247 = vpop.permute.xlu0 %1246
        %1248 = vrot.lane.b32.xlu0 %v1201, 96
        %v1249 = vpop.permute.xlu0 %1248
        %1250 = vrot.lane.b32.xlu0 %v1203, 96
        %v1251 = vpop.permute.xlu0 %1250
        %1252 = vrot.lane.b32.xlu0 %v1205, 96
        %v1253 = vpop.permute.xlu0 %1252
        %vm1254 = vcmask 392192
        %v1256 = vsel %vm1254, %v886, %v1109
        %v1258 = vsel %vm1254, %v887, %v1111
        %v1260 = vsel %vm1254, %v888, %v1113
        %v1262 = vsel %vm1254, %v889, %v1115
        %v1264 = vsel %vm1254, %v890, %v1117
        %v1266 = vsel %vm1254, %v891, %v1119
        %v1268 = vsel %vm1254, %v892, %v1121
        %v1270 = vsel %vm1254, %v893, %v1123
        %v1272 = vsel %vm1254, %v894, %v1125
        %v1274 = vsel %vm1254, %v895, %v1127
        %v1276 = vsel %vm1254, %v896, %v1129
        %v1278 = vsel %vm1254, %v897, %v1131
        %v1280 = vsel %vm1254, %v898, %v1133
        %v1282 = vsel %vm1254, %v899, %v1135
        %v1284 = vsel %vm1254, %v900, %v1137
        %v1286 = vsel %vm1254, %v901, %v1139
        %v1288 = vsel %vm1254, %v902, %v1141
        %v1290 = vsel %vm1254, %v903, %v1143
        %v1292 = vsel %vm1254, %v904, %v1145
        %v1294 = vsel %vm1254, %v905, %v1147
        %v1296 = vsel %vm1254, %v906, %v1149
        %v1298 = vsel %vm1254, %v907, %v1151
        %v1300 = vsel %vm1254, %v908, %v1153
        %v1302 = vsel %vm1254, %v909, %v1155
        %vm1303 = vcmask 785408
        %v1305 = vsel %vm1303, %v1256, %v1207
        %v1308 = vsel %vm1303, %v1258, %v1209
        %v1311 = vsel %vm1303, %v1260, %v1211
        %v1314 = vsel %vm1303, %v1262, %v1213
        %v1317 = vsel %vm1303, %v1264, %v1215
        %v1320 = vsel %vm1303, %v1266, %v1217
        %v1323 = vsel %vm1303, %v1268, %v1219
        %v1326 = vsel %vm1303, %v1270, %v1221
        %v1329 = vsel %vm1303, %v1272, %v1223
        %v1332 = vsel %vm1303, %v1274, %v1225
        %v1335 = vsel %vm1303, %v1276, %v1227
        %v1338 = vsel %vm1303, %v1278, %v1229
        %v1341 = vsel %vm1303, %v1280, %v1231
        %v1344 = vsel %vm1303, %v1282, %v1233
        %v1347 = vsel %vm1303, %v1284, %v1235
        %v1350 = vsel %vm1303, %v1286, %v1237
        %v1353 = vsel %vm1303, %v1288, %v1239
        %v1356 = vsel %vm1303, %v1290, %v1241
        %v1359 = vsel %vm1303, %v1292, %v1243
        %v1362 = vsel %vm1303, %v1294, %v1245
        %v1365 = vsel %vm1303, %v1296, %v1247
        %v1368 = vsel %vm1303, %v1298, %v1249
        %v1371 = vsel %vm1303, %v1300, %v1251
        %v1374 = vsel %vm1303, %v1302, %v1253
        %v1376 = vld [vmem:[#allocation5] sm:$0xf]
        %v1377 = vld [vmem:[#allocation5 + $0x4] sm:$0xf]
        %v1378 = vld [vmem:[#allocation5 + $0x8] sm:$0xf]
        %v1379 = vld [vmem:[#allocation5 + $0xc] sm:$0xf]
        %v1380 = vld [vmem:[#allocation5 + $0x10] sm:$0xf]
        %v1381 = vld [vmem:[#allocation5 + $0x14] sm:$0xf]
        %v1382 = vld [vmem:[#allocation5 + $0x18] sm:$0xf]
        %v1383 = vld [vmem:[#allocation5 + $0x1c] sm:$0xf]
        %v1384 = vld [vmem:[#allocation5 + $0x20] sm:$0xf]
        %v1385 = vld [vmem:[#allocation5 + $0x24] sm:$0xf]
        %v1386 = vld [vmem:[#allocation5 + $0x28] sm:$0xf]
        %v1387 = vld [vmem:[#allocation5 + $0x2c] sm:$0xf]
        %v1388 = vld [vmem:[#allocation5 + $0x30] sm:$0xf]
        %v1389 = vld [vmem:[#allocation5 + $0x34] sm:$0xf]
        %v1390 = vld [vmem:[#allocation5 + $0x38] sm:$0xf]
        %v1391 = vld [vmem:[#allocation5 + $0x3c] sm:$0xf]
        %v1392 = vld [vmem:[#allocation5 + $0x40] sm:$0xf]
        %v1393 = vld [vmem:[#allocation5 + $0x44] sm:$0xf]
        %v1412 = vunpack.c.l.b16 %v1376
        %v1413 = vunpack.c.l.b16 %v1377
        %v1414 = vunpack.c.l.b16 %v1378
        %v1415 = vunpack.c.l.b16 %v1379
        %v1416 = vunpack.c.l.b16 %v1380
        %v1417 = vunpack.c.l.b16 %v1381
        %v1418 = vunpack.c.l.b16 %v1382
        %v1419 = vunpack.c.l.b16 %v1383
        %v1420 = vunpack.c.l.b16 %v1384
        %v1421 = vunpack.c.l.b16 %v1385
        %v1422 = vunpack.c.l.b16 %v1386
        %v1423 = vunpack.c.l.b16 %v1387
        %v1424 = vunpack.c.l.b16 %v1388
        %v1425 = vunpack.c.l.b16 %v1389
        %v1426 = vunpack.c.l.b16 %v1390
        %v1427 = vunpack.c.l.b16 %v1391
        %v1428 = vunpack.c.l.b16 %v1392
        %v1429 = vunpack.c.l.b16 %v1393
        %v1430 = vpack.c.b16 %v1413, %v1412
        %v1431 = vpack.c.b16 %v1415, %v1414
        %v1432 = vpack.c.b16 %v1417, %v1416
        %v1433 = vpack.c.b16 %v1419, %v1418
        %v1434 = vpack.c.b16 %v1421, %v1420
        %v1435 = vpack.c.b16 %v1423, %v1422
        %v1436 = vpack.c.b16 %v1425, %v1424
        %v1437 = vpack.c.b16 %v1427, %v1426
        %v1438 = vpack.c.b16 %v1429, %v1428
        %v1448 = vsel %vm637, %v1207, 0
        %v1450 = vsel %vm637, %v1209, 0
        %v1452 = vsel %vm637, %v1211, 0
        %v1454 = vsel %vm637, %v1213, 0
        %v1456 = vsel %vm637, %v1215, 0
        %v1458 = vsel %vm637, %v1217, 0
        %v1460 = vsel %vm637, %v1219, 0
        %v1462 = vsel %vm637, %v1221, 0
        %v1464 = vsel %vm637, %v1223, 0
        %v1466 = vsel %vm637, %v1225, 0
        %v1468 = vsel %vm637, %v1227, 0
        %v1470 = vsel %vm637, %v1229, 0
        %v1472 = vsel %vm637, %v1231, 0
        %v1474 = vsel %vm637, %v1233, 0
        %v1476 = vsel %vm637, %v1235, 0
        %v1478 = vsel %vm637, %v1237, 0
        %v1480 = vsel %vm637, %v1239, 0
        %v1482 = vsel %vm637, %v1241, 0
        %v1484 = vsel %vm637, %v1243, 0
        %v1486 = vsel %vm637, %v1245, 0
        %v1488 = vsel %vm637, %v1247, 0
        %v1490 = vsel %vm637, %v1249, 0
        %v1492 = vsel %vm637, %v1251, 0
        %v1494 = vsel %vm637, %v1253, 0
        %1496 = vmatprep.subr.bf16.mxu0 0
        %1497 = vmatpush1.bf16.msra.mxu0 %v1430
        %1498 = vmatprep.subr.bf16.mxu0 0
        %1499 = vmatpush1.bf16.msra.mxu0 %v1431
        %1500 = vmatprep.subr.bf16.mxu0 0
        %1501 = vmatpush1.bf16.msra.mxu0 %v1432
        %1502 = vmatprep.subr.bf16.mxu0 0
        %1503 = vmatpush1.bf16.msra.mxu0 %v1433
        %1504 = vmatprep.subr.bf16.mxu0 0
        %1505 = vmatpush1.bf16.msra.mxu0 %v1434
        %1506 = vmatprep.subr.bf16.mxu0 0
        %1507 = vmatpush1.bf16.msra.mxu0 %v1435
        %1508 = vmatprep.subr.bf16.mxu0 0
        %1509 = vmatpush1.bf16.msra.mxu0 %v1436
        %1510 = vmatprep.subr.bf16.mxu0 0
        %1511 = vmatpush1.bf16.msra.mxu0 %v1437
        %1512 = vmatprep.subr.bf16.mxu0 0
        %1513 = vmatpush1.bf16.msra.mxu0 %v1438
        %1514 = vmatprep.subr.bf16.mxu0 0
        %1515 = vmatpush1.bf16.msra.mxu0 0
        %1516 = vmatprep.subr.bf16.mxu0 0
        %1517 = vmatpush1.bf16.msra.mxu0 0
        %1518 = vmatprep.subr.bf16.mxu0 0
        %1519 = vmatpush1.bf16.msra.mxu0 0
        %1520 = vmatprep.subr.bf16.mxu0 0
        %1521 = vmatpush1.bf16.msra.mxu0 0
        %1522 = vmatprep.subr.bf16.mxu0 0
        %1523 = vmatpush1.bf16.msra.mxu0 0
        %1524 = vmatprep.subr.bf16.mxu0 0
        %1525 = vmatpush1.bf16.msra.mxu0 0
        %1526 = vmatprep.subr.bf16.mxu0 0
        %1527 = vmatpush1.bf16.msra.mxu0 0
        %1528 = vmatprep.mubr.bf16.mxu0 %v1448
        %1529 = vmatmul.mubr.bf16.gmra.mrb[0].mxu0 %v1305
        %v1530 = vpop.f32.mrb[0].mxu0
        %v1531 = vadd.f32 0.0, %v1530
        %v1532 = vpop.f32.mrb[0].mxu0
        %v1533 = vpop.f32.mrb[0].mxu0
        %v1534 = vadd.f32 0.0, %v1533
        %v1535 = vpop.f32.mrb[0].mxu0
        %1536 = vmatprep.mubr.bf16.mxu0 %v1450
        %1537 = vmatmul.mubr.bf16.gmra.mrb[0].mxu0 %v1308
        %v1538 = vpop.f32.mrb[0].mxu0
        %v1539 = vpop.f32.mrb[0].mxu0
        %v1540 = vpop.f32.mrb[0].mxu0
        %v1541 = vadd.f32 0.0, %v1540
        %v1542 = vpop.f32.mrb[0].mxu0
        %1543 = vmatprep.mubr.bf16.mxu0 %v1452
        %1544 = vmatmul.mubr.bf16.gmra.mrb[0].mxu0 %v1311
        %v1545 = vpop.f32.mrb[0].mxu0
        %v1546 = vadd.f32 0.0, %v1545
        %v1547 = vpop.f32.mrb[0].mxu0
        %v1548 = vpop.f32.mrb[0].mxu0
        %v1549 = vpop.f32.mrb[0].mxu0
        %1550 = vmatprep.mubr.bf16.mxu0 %v1454
        %1551 = vmatmul.mubr.bf16.gmra.mrb[0].mxu0 %v1314
        %v1552 = vpop.f32.mrb[0].mxu0
        %v1553 = vadd.f32 0.0, %v1552
        %v1554 = vpop.f32.mrb[0].mxu0
        %v1555 = vpop.f32.mrb[0].mxu0
        %v1556 = vadd.f32 0.0, %v1555
        %v1557 = vpop.f32.mrb[0].mxu0
        %1558 = vmatprep.mubr.bf16.mxu0 %v1456
        %1559 = vmatmul.mubr.bf16.gmra.mrb[0].mxu0 %v1317
        %v1560 = vpop.f32.mrb[0].mxu0
        %v1561 = vpop.f32.mrb[0].mxu0
        %v1562 = vpop.f32.mrb[0].mxu0
        %v1563 = vadd.f32 0.0, %v1562
        %v1564 = vpop.f32.mrb[0].mxu0
        %1565 = vmatprep.mubr.bf16.mxu0 %v1458
        %1566 = vmatmul.mubr.bf16.gmra.mrb[0].mxu0 %v1320
        %v1567 = vpop.f32.mrb[0].mxu0
        %v1568 = vadd.f32 0.0, %v1567
        %v1569 = vpop.f32.mrb[0].mxu0
        %v1570 = vpop.f32.mrb[0].mxu0
        %v1571 = vpop.f32.mrb[0].mxu0
        %1572 = vmatprep.mubr.bf16.mxu0 %v1460
        %1573 = vmatmul.mubr.bf16.gmra.mrb[0].mxu0 %v1323
        %v1574 = vpop.f32.mrb[0].mxu0
        %v1575 = vadd.f32 0.0, %v1574
        %v1576 = vpop.f32.mrb[0].mxu0
        %v1577 = vpop.f32.mrb[0].mxu0
        %v1578 = vadd.f32 0.0, %v1577
        %v1579 = vpop.f32.mrb[0].mxu0
        %1580 = vmatprep.mubr.bf16.mxu0 %v1462
        %1581 = vmatmul.mubr.bf16.gmra.mrb[0].mxu0 %v1326
        %v1582 = vpop.f32.mrb[0].mxu0
        %v1583 = vpop.f32.mrb[0].mxu0
        %v1584 = vpop.f32.mrb[0].mxu0
        %v1585 = vadd.f32 0.0, %v1584
        %v1586 = vpop.f32.mrb[0].mxu0
        %1587 = vmatprep.mubr.bf16.mxu0 %v1464
        %1588 = vmatmul.mubr.bf16.gmra.mrb[0].mxu0 %v1329
        %v1589 = vpop.f32.mrb[0].mxu0
        %v1590 = vadd.f32 0.0, %v1589
        %v1591 = vpop.f32.mrb[0].mxu0
        %v1592 = vpop.f32.mrb[0].mxu0
        %v1593 = vpop.f32.mrb[0].mxu0
        %1594 = vmatprep.mubr.bf16.mxu0 %v1466
        %1595 = vmatmul.mubr.bf16.gmra.mrb[0].mxu0 %v1332
        %v1596 = vpop.f32.mrb[0].mxu0
        %v1597 = vadd.f32 0.0, %v1596
        %v1598 = vpop.f32.mrb[0].mxu0
        %v1599 = vpop.f32.mrb[0].mxu0
        %v1600 = vadd.f32 0.0, %v1599
        %v1601 = vpop.f32.mrb[0].mxu0
        %1602 = vmatprep.mubr.bf16.mxu0 %v1468
        %1603 = vmatmul.mubr.bf16.gmra.mrb[0].mxu0 %v1335
        %v1604 = vpop.f32.mrb[0].mxu0
        %v1605 = vpop.f32.mrb[0].mxu0
        %v1606 = vpop.f32.mrb[0].mxu0
        %v1607 = vadd.f32 0.0, %v1606
        %v1608 = vpop.f32.mrb[0].mxu0
        %1609 = vmatprep.mubr.bf16.mxu0 %v1470
        %1610 = vmatmul.mubr.bf16.gmra.mrb[0].mxu0 %v1338
        %v1611 = vpop.f32.mrb[0].mxu0
        %v1612 = vadd.f32 0.0, %v1611
        %v1613 = vpop.f32.mrb[0].mxu0
        %v1614 = vpop.f32.mrb[0].mxu0
        %v1615 = vpop.f32.mrb[0].mxu0
        %1616 = vmatprep.mubr.bf16.mxu0 %v1472
        %1617 = vmatmul.mubr.bf16.gmra.mrb[0].mxu0 %v1341
        %v1618 = vpop.f32.mrb[0].mxu0
        %v1619 = vadd.f32 0.0, %v1618
        %v1620 = vpop.f32.mrb[0].mxu0
        %v1621 = vpop.f32.mrb[0].mxu0
        %v1622 = vadd.f32 0.0, %v1621
        %v1623 = vpop.f32.mrb[0].mxu0
        %1624 = vmatprep.mubr.bf16.mxu0 %v1474
        %1625 = vmatmul.mubr.bf16.gmra.mrb[0].mxu0 %v1344
        %v1626 = vpop.f32.mrb[0].mxu0
        %v1627 = vpop.f32.mrb[0].mxu0
        %v1628 = vpop.f32.mrb[0].mxu0
        %v1629 = vadd.f32 0.0, %v1628
        %v1630 = vpop.f32.mrb[0].mxu0
        %1631 = vmatprep.mubr.bf16.mxu0 %v1476
        %1632 = vmatmul.mubr.bf16.gmra.mrb[0].mxu0 %v1347
        %v1633 = vpop.f32.mrb[0].mxu0
        %v1634 = vadd.f32 0.0, %v1633
        %v1635 = vpop.f32.mrb[0].mxu0
        %v1636 = vpop.f32.mrb[0].mxu0
        %v1637 = vpop.f32.mrb[0].mxu0
        %1638 = vmatprep.mubr.bf16.mxu0 %v1478
        %1639 = vmatmul.mubr.bf16.gmra.mrb[0].mxu0 %v1350
        %v1640 = vpop.f32.mrb[0].mxu0
        %v1641 = vadd.f32 0.0, %v1640
        %v1642 = vpop.f32.mrb[0].mxu0
        %v1643 = vpop.f32.mrb[0].mxu0
        %v1644 = vadd.f32 0.0, %v1643
        %v1645 = vpop.f32.mrb[0].mxu0
        %1646 = vmatprep.mubr.bf16.mxu0 %v1480
        %1647 = vmatmul.mubr.bf16.gmra.mrb[0].mxu0 %v1353
        %v1648 = vpop.f32.mrb[0].mxu0
        %v1649 = vpop.f32.mrb[0].mxu0
        %v1650 = vpop.f32.mrb[0].mxu0
        %v1651 = vadd.f32 0.0, %v1650
        %v1652 = vpop.f32.mrb[0].mxu0
        %1653 = vmatprep.mubr.bf16.mxu0 %v1482
        %1654 = vmatmul.mubr.bf16.gmra.mrb[0].mxu0 %v1356
        %v1655 = vpop.f32.mrb[0].mxu0
        %v1656 = vadd.f32 0.0, %v1655
        %v1657 = vpop.f32.mrb[0].mxu0
        %v1658 = vpop.f32.mrb[0].mxu0
        %v1659 = vpop.f32.mrb[0].mxu0
        %1660 = vmatprep.mubr.bf16.mxu0 %v1484
        %1661 = vmatmul.mubr.bf16.gmra.mrb[0].mxu0 %v1359
        %v1662 = vpop.f32.mrb[0].mxu0
        %v1663 = vadd.f32 0.0, %v1662
        %v1664 = vpop.f32.mrb[0].mxu0
        %v1665 = vpop.f32.mrb[0].mxu0
        %v1666 = vadd.f32 0.0, %v1665
        %v1667 = vpop.f32.mrb[0].mxu0
        %1668 = vmatprep.mubr.bf16.mxu0 %v1486
        %1669 = vmatmul.mubr.bf16.gmra.mrb[0].mxu0 %v1362
        %v1670 = vpop.f32.mrb[0].mxu0
        %v1671 = vpop.f32.mrb[0].mxu0
        %v1672 = vpop.f32.mrb[0].mxu0
        %v1673 = vadd.f32 0.0, %v1672
        %v1674 = vpop.f32.mrb[0].mxu0
        %1675 = vmatprep.mubr.bf16.mxu0 %v1488
        %1676 = vmatmul.mubr.bf16.gmra.mrb[0].mxu0 %v1365
        %v1677 = vpop.f32.mrb[0].mxu0
        %v1678 = vadd.f32 0.0, %v1677
        %v1679 = vpop.f32.mrb[0].mxu0
        %v1680 = vpop.f32.mrb[0].mxu0
        %v1681 = vpop.f32.mrb[0].mxu0
        %1682 = vmatprep.mubr.bf16.mxu0 %v1490
        %1683 = vmatmul.mubr.bf16.gmra.mrb[0].mxu0 %v1368
        %v1684 = vpop.f32.mrb[0].mxu0
        %v1685 = vadd.f32 0.0, %v1684
        %v1686 = vpop.f32.mrb[0].mxu0
        %v1687 = vpop.f32.mrb[0].mxu0
        %v1688 = vadd.f32 0.0, %v1687
        %v1689 = vpop.f32.mrb[0].mxu0
        %1690 = vmatprep.mubr.bf16.mxu0 %v1492
        %1691 = vmatmul.mubr.bf16.gmra.mrb[0].mxu0 %v1371
        %v1692 = vpop.f32.mrb[0].mxu0
        %v1693 = vpop.f32.mrb[0].mxu0
        %v1694 = vpop.f32.mrb[0].mxu0
        %v1695 = vadd.f32 0.0, %v1694
        %v1696 = vpop.f32.mrb[0].mxu0
        %1697 = vmatprep.mubr.bf16.mxu0 %v1494
        %1698 = vmatmul.mubr.bf16.gmra.mrb[0].mxu0 %v1374
        %v1699 = vpop.f32.mrb[0].mxu0
        %v1700 = vadd.f32 0.0, %v1699
        %v1701 = vpop.f32.mrb[0].mxu0
        %v1702 = vpop.f32.mrb[0].mxu0
        %v1703 = vpop.f32.mrb[0].mxu0
        %1704 = vdwg.mxu0
        %v1705 = vld [vmem:[#allocation7] sm:$0x1]
        %v1707 = vlaneseq
        %v1708 = vshrl.u32 %v1707, 7
        %v1709 = vsub.s32 0, %v1708
        %v1710 = vrot.slane %v1705, %v1709
        %v1712 = vmul.f32 %v1531, %v1710
        %v1713 = vmul.f32 %v1534, %v1710
        %v1714 = vmul.f32 %v1541, %v1710
        %v1715 = vmul.f32 %v1546, %v1710
        %v1716 = vmul.f32 %v1553, %v1710
        %v1717 = vmul.f32 %v1556, %v1710
        %v1718 = vmul.f32 %v1563, %v1710
        %v1719 = vmul.f32 %v1568, %v1710
        %v1720 = vmul.f32 %v1575, %v1710
        %v1721 = vmul.f32 %v1578, %v1710
        %v1722 = vmul.f32 %v1585, %v1710
        %v1723 = vmul.f32 %v1590, %v1710
        %v1724 = vmul.f32 %v1597, %v1710
        %v1725 = vmul.f32 %v1600, %v1710
        %v1726 = vmul.f32 %v1607, %v1710
        %v1727 = vmul.f32 %v1612, %v1710
        %v1728 = vmul.f32 %v1619, %v1710
        %v1729 = vmul.f32 %v1622, %v1710
        %v1730 = vmul.f32 %v1629, %v1710
        %v1731 = vmul.f32 %v1634, %v1710
        %v1732 = vmul.f32 %v1641, %v1710
        %v1733 = vmul.f32 %v1644, %v1710
        %v1734 = vmul.f32 %v1651, %v1710
        %v1735 = vmul.f32 %v1656, %v1710
        %v1736 = vmul.f32 %v1663, %v1710
        %v1737 = vmul.f32 %v1666, %v1710
        %v1738 = vmul.f32 %v1673, %v1710
        %v1739 = vmul.f32 %v1678, %v1710
        %v1740 = vmul.f32 %v1685, %v1710
        %v1741 = vmul.f32 %v1688, %v1710
        %v1742 = vmul.f32 %v1695, %v1710
        %v1743 = vmul.f32 %v1700, %v1710
        %v1744 = vld [vmem:[#allocation8] sm:$0x1]
        %v1746 = vlaneseq
        %v1747 = vshrl.u32 %v1746, 7
        %v1748 = vsub.s32 0, %v1747
        %v1749 = vrot.slane %v1744, %v1748
        %v1751 = vadd.f32 %v1712, %v1749
        %v1752 = vadd.f32 %v1713, %v1749
        %v1753 = vadd.f32 %v1714, %v1749
        %v1754 = vadd.f32 %v1715, %v1749
        %v1755 = vadd.f32 %v1716, %v1749
        %v1756 = vadd.f32 %v1717, %v1749
        %v1757 = vadd.f32 %v1718, %v1749
        %v1758 = vadd.f32 %v1719, %v1749
        %v1759 = vadd.f32 %v1720, %v1749
        %v1760 = vadd.f32 %v1721, %v1749
        %v1761 = vadd.f32 %v1722, %v1749
        %v1762 = vadd.f32 %v1723, %v1749
        %v1763 = vadd.f32 %v1724, %v1749
        %v1764 = vadd.f32 %v1725, %v1749
        %v1765 = vadd.f32 %v1726, %v1749
        %v1766 = vadd.f32 %v1727, %v1749
        %v1767 = vadd.f32 %v1728, %v1749
        %v1768 = vadd.f32 %v1729, %v1749
        %v1769 = vadd.f32 %v1730, %v1749
        %v1770 = vadd.f32 %v1731, %v1749
        %v1771 = vadd.f32 %v1732, %v1749
        %v1772 = vadd.f32 %v1733, %v1749
        %v1773 = vadd.f32 %v1734, %v1749
        %v1774 = vadd.f32 %v1735, %v1749
        %v1775 = vadd.f32 %v1736, %v1749
        %v1776 = vadd.f32 %v1737, %v1749
        %v1777 = vadd.f32 %v1738, %v1749
        %v1778 = vadd.f32 %v1739, %v1749
        %v1779 = vadd.f32 %v1740, %v1749
        %v1780 = vadd.f32 %v1741, %v1749
        %v1781 = vadd.f32 %v1742, %v1749
        %v1782 = vadd.f32 %v1743, %v1749
        %v1783 = vsub.f32 0.0, %v1751
        %v1784 = vsub.f32 0.0, %v1752
        %v1785 = vsub.f32 0.0, %v1753
        %v1786 = vsub.f32 0.0, %v1754
        %v1787 = vsub.f32 0.0, %v1755
        %v1788 = vsub.f32 0.0, %v1756
        %v1789 = vsub.f32 0.0, %v1757
        %v1790 = vsub.f32 0.0, %v1758
        %v1791 = vsub.f32 0.0, %v1759
        %v1792 = vsub.f32 0.0, %v1760
        %v1793 = vsub.f32 0.0, %v1761
        %v1794 = vsub.f32 0.0, %v1762
        %v1795 = vsub.f32 0.0, %v1763
        %v1796 = vsub.f32 0.0, %v1764
        %v1797 = vsub.f32 0.0, %v1765
        %v1798 = vsub.f32 0.0, %v1766
        %v1799 = vsub.f32 0.0, %v1767
        %v1800 = vsub.f32 0.0, %v1768
        %v1801 = vsub.f32 0.0, %v1769
        %v1802 = vsub.f32 0.0, %v1770
        %v1803 = vsub.f32 0.0, %v1771
        %v1804 = vsub.f32 0.0, %v1772
        %v1805 = vsub.f32 0.0, %v1773
        %v1806 = vsub.f32 0.0, %v1774
        %v1807 = vsub.f32 0.0, %v1775
        %v1808 = vsub.f32 0.0, %v1776
        %v1809 = vsub.f32 0.0, %v1777
        %v1810 = vsub.f32 0.0, %v1778
        %v1811 = vsub.f32 0.0, %v1779
        %v1812 = vsub.f32 0.0, %v1780
        %v1813 = vsub.f32 0.0, %v1781
        %v1814 = vsub.f32 0.0, %v1782
        %v1815 = vmul.f32 %v1783, 1.442695
        %v1816 = vpow.pop %v1815
        %v1817 = vmul.f32 %v1784, 1.442695
        %v1818 = vpow.pop %v1817
        %v1819 = vmul.f32 %v1785, 1.442695
        %v1820 = vpow.pop %v1819
        %v1821 = vmul.f32 %v1786, 1.442695
        %v1822 = vpow.pop %v1821
        %v1823 = vmul.f32 %v1787, 1.442695
        %v1824 = vpow.pop %v1823
        %v1825 = vmul.f32 %v1788, 1.442695
        %v1826 = vpow.pop %v1825
        %v1827 = vmul.f32 %v1789, 1.442695
        %v1828 = vpow.pop %v1827
        %v1829 = vmul.f32 %v1790, 1.442695
        %v1830 = vpow.pop %v1829
        %v1831 = vmul.f32 %v1791, 1.442695
        %v1832 = vpow.pop %v1831
        %v1833 = vmul.f32 %v1792, 1.442695
        %v1834 = vpow.pop %v1833
        %v1835 = vmul.f32 %v1793, 1.442695
        %v1836 = vpow.pop %v1835
        %v1837 = vmul.f32 %v1794, 1.442695
        %v1838 = vpow.pop %v1837
        %v1839 = vmul.f32 %v1795, 1.442695
        %v1840 = vpow.pop %v1839
        %v1841 = vmul.f32 %v1796, 1.442695
        %v1842 = vpow.pop %v1841
        %v1843 = vmul.f32 %v1797, 1.442695
        %v1844 = vpow.pop %v1843
        %v1845 = vmul.f32 %v1798, 1.442695
        %v1846 = vpow.pop %v1845
        %v1847 = vmul.f32 %v1799, 1.442695
        %v1848 = vpow.pop %v1847
        %v1849 = vmul.f32 %v1800, 1.442695
        %v1850 = vpow.pop %v1849
        %v1851 = vmul.f32 %v1801, 1.442695
        %v1852 = vpow.pop %v1851
        %v1853 = vmul.f32 %v1802, 1.442695
        %v1854 = vpow.pop %v1853
        %v1855 = vmul.f32 %v1803, 1.442695
        %v1856 = vpow.pop %v1855
        %v1857 = vmul.f32 %v1804, 1.442695
        %v1858 = vpow.pop %v1857
        %v1859 = vmul.f32 %v1805, 1.442695
        %v1860 = vpow.pop %v1859
        %v1861 = vmul.f32 %v1806, 1.442695
        %v1862 = vpow.pop %v1861
        %v1863 = vmul.f32 %v1807, 1.442695
        %v1864 = vpow.pop %v1863
        %v1865 = vmul.f32 %v1808, 1.442695
        %v1866 = vpow.pop %v1865
        %v1867 = vmul.f32 %v1809, 1.442695
        %v1868 = vpow.pop %v1867
        %v1869 = vmul.f32 %v1810, 1.442695
        %v1870 = vpow.pop %v1869
        %v1871 = vmul.f32 %v1811, 1.442695
        %v1872 = vpow.pop %v1871
        %v1873 = vmul.f32 %v1812, 1.442695
        %v1874 = vpow.pop %v1873
        %v1875 = vmul.f32 %v1813, 1.442695
        %v1876 = vpow.pop %v1875
        %v1877 = vmul.f32 %v1814, 1.442695
        %v1878 = vpow.pop %v1877
        %v1879 = vadd.f32 %v1816, 1.0
        %v1880 = vadd.f32 %v1818, 1.0
        %v1881 = vadd.f32 %v1820, 1.0
        %v1882 = vadd.f32 %v1822, 1.0
        %v1883 = vadd.f32 %v1824, 1.0
        %v1884 = vadd.f32 %v1826, 1.0
        %v1885 = vadd.f32 %v1828, 1.0
        %v1886 = vadd.f32 %v1830, 1.0
        %v1887 = vadd.f32 %v1832, 1.0
        %v1888 = vadd.f32 %v1834, 1.0
        %v1889 = vadd.f32 %v1836, 1.0
        %v1890 = vadd.f32 %v1838, 1.0
        %v1891 = vadd.f32 %v1840, 1.0
        %v1892 = vadd.f32 %v1842, 1.0
        %v1893 = vadd.f32 %v1844, 1.0
        %v1894 = vadd.f32 %v1846, 1.0
        %v1895 = vadd.f32 %v1848, 1.0
        %v1896 = vadd.f32 %v1850, 1.0
        %v1897 = vadd.f32 %v1852, 1.0
        %v1898 = vadd.f32 %v1854, 1.0
        %v1899 = vadd.f32 %v1856, 1.0
        %v1900 = vadd.f32 %v1858, 1.0
        %v1901 = vadd.f32 %v1860, 1.0
        %v1902 = vadd.f32 %v1862, 1.0
        %v1903 = vadd.f32 %v1864, 1.0
        %v1904 = vadd.f32 %v1866, 1.0
        %v1905 = vadd.f32 %v1868, 1.0
        %v1906 = vadd.f32 %v1870, 1.0
        %v1907 = vadd.f32 %v1872, 1.0
        %v1908 = vadd.f32 %v1874, 1.0
        %v1909 = vadd.f32 %v1876, 1.0
        %v1910 = vadd.f32 %v1878, 1.0
        %v1911 = vrcp.pop %v1879
        %v1912 = vrcp.pop %v1880
        %v1913 = vrcp.pop %v1881
        %v1914 = vrcp.pop %v1882
        %v1915 = vrcp.pop %v1883
        %v1916 = vrcp.pop %v1884
        %v1917 = vrcp.pop %v1885
        %v1918 = vrcp.pop %v1886
        %v1919 = vrcp.pop %v1887
        %v1920 = vrcp.pop %v1888
        %v1921 = vrcp.pop %v1889
        %v1922 = vrcp.pop %v1890
        %v1923 = vrcp.pop %v1891
        %v1924 = vrcp.pop %v1892
        %v1925 = vrcp.pop %v1893
        %v1926 = vrcp.pop %v1894
        %v1927 = vrcp.pop %v1895
        %v1928 = vrcp.pop %v1896
        %v1929 = vrcp.pop %v1897
        %v1930 = vrcp.pop %v1898
        %v1931 = vrcp.pop %v1899
        %v1932 = vrcp.pop %v1900
        %v1933 = vrcp.pop %v1901
        %v1934 = vrcp.pop %v1902
        %v1935 = vrcp.pop %v1903
        %v1936 = vrcp.pop %v1904
        %v1937 = vrcp.pop %v1905
        %v1938 = vrcp.pop %v1906
        %v1939 = vrcp.pop %v1907
        %v1940 = vrcp.pop %v1908
        %v1941 = vrcp.pop %v1909
        %v1942 = vrcp.pop %v1910
        %v1943 = vmul.f32 %v1751, %v1911
        %v1944 = vmul.f32 %v1752, %v1912
        %v1945 = vmul.f32 %v1753, %v1913
        %v1946 = vmul.f32 %v1754, %v1914
        %v1947 = vmul.f32 %v1755, %v1915
        %v1948 = vmul.f32 %v1756, %v1916
        %v1949 = vmul.f32 %v1757, %v1917
        %v1950 = vmul.f32 %v1758, %v1918
        %v1951 = vmul.f32 %v1759, %v1919
        %v1952 = vmul.f32 %v1760, %v1920
        %v1953 = vmul.f32 %v1761, %v1921
        %v1954 = vmul.f32 %v1762, %v1922
        %v1955 = vmul.f32 %v1763, %v1923
        %v1956 = vmul.f32 %v1764, %v1924
        %v1957 = vmul.f32 %v1765, %v1925
        %v1958 = vmul.f32 %v1766, %v1926
        %v1959 = vmul.f32 %v1767, %v1927
        %v1960 = vmul.f32 %v1768, %v1928
        %v1961 = vmul.f32 %v1769, %v1929
        %v1962 = vmul.f32 %v1770, %v1930
        %v1963 = vmul.f32 %v1771, %v1931
        %v1964 = vmul.f32 %v1772, %v1932
        %v1965 = vmul.f32 %v1773, %v1933
        %v1966 = vmul.f32 %v1774, %v1934
        %v1967 = vmul.f32 %v1775, %v1935
        %v1968 = vmul.f32 %v1776, %v1936
        %v1969 = vmul.f32 %v1777, %v1937
        %v1970 = vmul.f32 %v1778, %v1938
        %v1971 = vmul.f32 %v1779, %v1939
        %v1972 = vmul.f32 %v1780, %v1940
        %v1973 = vmul.f32 %v1781, %v1941
        %v1974 = vmul.f32 %v1782, %v1942
        %v1975 = vcombine.low %v1943, %v1947
        %v1976 = vcombine.high %v1943, %v1947
        %v1978 = vunpack.c.l.s4 1983009808
        %v1979 = vunpack.c.0.s8 %v1978
        %v1980 = vlaneseq
        %v1981 = vshrl.u32 %v1980, 7
        %v1982 = vsub.s32 %v1979, %v1981
        %v1983 = vrot.slane %v1975, %v1982
        %v1985 = vunpack.c.l.s4 1983009808
        %v1986 = vunpack.c.0.s8 %v1985
        %v1987 = vlaneseq
        %v1988 = vshrl.u32 %v1987, 7
        %v1989 = vsub.s32 %v1986, %v1988
        %v1990 = vrot.slane %v1976, %v1989
        %v1991 = vcombine.low %v1945, %v1949
        %v1992 = vcombine.high %v1945, %v1949
        %v1994 = vunpack.c.l.s4 1983009808
        %v1995 = vunpack.c.0.s8 %v1994
        %v1996 = vlaneseq
        %v1997 = vshrl.u32 %v1996, 7
        %v1998 = vsub.s32 %v1995, %v1997
        %v1999 = vrot.slane %v1991, %v1998
        %v2001 = vunpack.c.l.s4 1983009808
        %v2002 = vunpack.c.0.s8 %v2001
        %v2003 = vlaneseq
        %v2004 = vshrl.u32 %v2003, 7
        %v2005 = vsub.s32 %v2002, %v2004
        %v2006 = vrot.slane %v1992, %v2005
        %v2007 = vcombine.low %v1951, %v1955
        %v2008 = vcombine.high %v1951, %v1955
        %v2010 = vunpack.c.l.s4 1983009808
        %v2011 = vunpack.c.0.s8 %v2010
        %v2012 = vlaneseq
        %v2013 = vshrl.u32 %v2012, 7
        %v2014 = vsub.s32 %v2011, %v2013
        %v2015 = vrot.slane %v2007, %v2014
        %v2017 = vunpack.c.l.s4 1983009808
        %v2018 = vunpack.c.0.s8 %v2017
        %v2019 = vlaneseq
        %v2020 = vshrl.u32 %v2019, 7
        %v2021 = vsub.s32 %v2018, %v2020
        %v2022 = vrot.slane %v2008, %v2021
        %v2023 = vcombine.low %v1953, %v1957
        %v2024 = vcombine.high %v1953, %v1957
        %v2026 = vunpack.c.l.s4 1983009808
        %v2027 = vunpack.c.0.s8 %v2026
        %v2028 = vlaneseq
        %v2029 = vshrl.u32 %v2028, 7
        %v2030 = vsub.s32 %v2027, %v2029
        %v2031 = vrot.slane %v2023, %v2030
        %v2033 = vunpack.c.l.s4 1983009808
        %v2034 = vunpack.c.0.s8 %v2033
        %v2035 = vlaneseq
        %v2036 = vshrl.u32 %v2035, 7
        %v2037 = vsub.s32 %v2034, %v2036
        %v2038 = vrot.slane %v2024, %v2037
        %v2039 = vcombine.low %v1983, %v1999
        %v2040 = vcombine.high %v1983, %v1999
        %v2042 = vunpack.c.l.s4 1934713408
        %v2043 = vunpack.c.0.s8 %v2042
        %v2044 = vlaneseq
        %v2045 = vshrl.u32 %v2044, 7
        %v2046 = vsub.s32 %v2043, %v2045
        %v2047 = vrot.slane %v2039, %v2046
        %v2049 = vunpack.c.l.s4 1934713408
        %v2050 = vunpack.c.0.s8 %v2049
        %v2051 = vlaneseq
        %v2052 = vshrl.u32 %v2051, 7
        %v2053 = vsub.s32 %v2050, %v2052
        %v2054 = vrot.slane %v2040, %v2053
        %v2055 = vcombine.low %v1990, %v2006
        %v2056 = vcombine.high %v1990, %v2006
        %v2058 = vunpack.c.l.s4 1934713408
        %v2059 = vunpack.c.0.s8 %v2058
        %v2060 = vlaneseq
        %v2061 = vshrl.u32 %v2060, 7
        %v2062 = vsub.s32 %v2059, %v2061
        %v2063 = vrot.slane %v2055, %v2062
        %v2065 = vunpack.c.l.s4 1934713408
        %v2066 = vunpack.c.0.s8 %v2065
        %v2067 = vlaneseq
        %v2068 = vshrl.u32 %v2067, 7
        %v2069 = vsub.s32 %v2066, %v2068
        %v2070 = vrot.slane %v2056, %v2069
        %v2071 = vcombine.low %v2015, %v2031
        %v2072 = vcombine.high %v2015, %v2031
        %v2074 = vunpack.c.l.s4 1934713408
        %v2075 = vunpack.c.0.s8 %v2074
        %v2076 = vlaneseq
        %v2077 = vshrl.u32 %v2076, 7
        %v2078 = vsub.s32 %v2075, %v2077
        %v2079 = vrot.slane %v2071, %v2078
        %v2081 = vunpack.c.l.s4 1934713408
        %v2082 = vunpack.c.0.s8 %v2081
        %v2083 = vlaneseq
        %v2084 = vshrl.u32 %v2083, 7
        %v2085 = vsub.s32 %v2082, %v2084
        %v2086 = vrot.slane %v2072, %v2085
        %v2087 = vcombine.low %v2022, %v2038
        %v2088 = vcombine.high %v2022, %v2038
        %v2090 = vunpack.c.l.s4 1934713408
        %v2091 = vunpack.c.0.s8 %v2090
        %v2092 = vlaneseq
        %v2093 = vshrl.u32 %v2092, 7
        %v2094 = vsub.s32 %v2091, %v2093
        %v2095 = vrot.slane %v2087, %v2094
        %v2097 = vunpack.c.l.s4 1934713408
        %v2098 = vunpack.c.0.s8 %v2097
        %v2099 = vlaneseq
        %v2100 = vshrl.u32 %v2099, 7
        %v2101 = vsub.s32 %v2098, %v2100
        %v2102 = vrot.slane %v2088, %v2101
        %v2103 = vcombine.low %v2047, %v2079
        %v2104 = vcombine.high %v2047, %v2079
        %v2105 = vcombine.low %v2054, %v2086
        %v2106 = vcombine.high %v2054, %v2086
        %v2107 = vcombine.low %v2063, %v2095
        %v2108 = vcombine.high %v2063, %v2095
        %v2109 = vcombine.low %v2070, %v2102
        %v2110 = vcombine.high %v2070, %v2102
        %v2111 = vcombine.low %v1959, %v1963
        %v2112 = vcombine.high %v1959, %v1963
        %v2114 = vunpack.c.l.s4 1983009808
        %v2115 = vunpack.c.0.s8 %v2114
        %v2116 = vlaneseq
        %v2117 = vshrl.u32 %v2116, 7
        %v2118 = vsub.s32 %v2115, %v2117
        %v2119 = vrot.slane %v2111, %v2118
        %v2121 = vunpack.c.l.s4 1983009808
        %v2122 = vunpack.c.0.s8 %v2121
        %v2123 = vlaneseq
        %v2124 = vshrl.u32 %v2123, 7
        %v2125 = vsub.s32 %v2122, %v2124
        %v2126 = vrot.slane %v2112, %v2125
        %v2127 = vcombine.low %v1961, %v1965
        %v2128 = vcombine.high %v1961, %v1965
        %v2130 = vunpack.c.l.s4 1983009808
        %v2131 = vunpack.c.0.s8 %v2130
        %v2132 = vlaneseq
        %v2133 = vshrl.u32 %v2132, 7
        %v2134 = vsub.s32 %v2131, %v2133
        %v2135 = vrot.slane %v2127, %v2134
        %v2137 = vunpack.c.l.s4 1983009808
        %v2138 = vunpack.c.0.s8 %v2137
        %v2139 = vlaneseq
        %v2140 = vshrl.u32 %v2139, 7
        %v2141 = vsub.s32 %v2138, %v2140
        %v2142 = vrot.slane %v2128, %v2141
        %v2143 = vcombine.low %v1967, %v1971
        %v2144 = vcombine.high %v1967, %v1971
        %v2146 = vunpack.c.l.s4 1983009808
        %v2147 = vunpack.c.0.s8 %v2146
        %v2148 = vlaneseq
        %v2149 = vshrl.u32 %v2148, 7
        %v2150 = vsub.s32 %v2147, %v2149
        %v2151 = vrot.slane %v2143, %v2150
        %v2153 = vunpack.c.l.s4 1983009808
        %v2154 = vunpack.c.0.s8 %v2153
        %v2155 = vlaneseq
        %v2156 = vshrl.u32 %v2155, 7
        %v2157 = vsub.s32 %v2154, %v2156
        %v2158 = vrot.slane %v2144, %v2157
        %v2159 = vcombine.low %v1969, %v1973
        %v2160 = vcombine.high %v1969, %v1973
        %v2162 = vunpack.c.l.s4 1983009808
        %v2163 = vunpack.c.0.s8 %v2162
        %v2164 = vlaneseq
        %v2165 = vshrl.u32 %v2164, 7
        %v2166 = vsub.s32 %v2163, %v2165
        %v2167 = vrot.slane %v2159, %v2166
        %v2169 = vunpack.c.l.s4 1983009808
        %v2170 = vunpack.c.0.s8 %v2169
        %v2171 = vlaneseq
        %v2172 = vshrl.u32 %v2171, 7
        %v2173 = vsub.s32 %v2170, %v2172
        %v2174 = vrot.slane %v2160, %v2173
        %v2175 = vcombine.low %v2119, %v2135
        %v2176 = vcombine.high %v2119, %v2135
        %v2178 = vunpack.c.l.s4 1934713408
        %v2179 = vunpack.c.0.s8 %v2178
        %v2180 = vlaneseq
        %v2181 = vshrl.u32 %v2180, 7
        %v2182 = vsub.s32 %v2179, %v2181
        %v2183 = vrot.slane %v2175, %v2182
        %v2185 = vunpack.c.l.s4 1934713408
        %v2186 = vunpack.c.0.s8 %v2185
        %v2187 = vlaneseq
        %v2188 = vshrl.u32 %v2187, 7
        %v2189 = vsub.s32 %v2186, %v2188
        %v2190 = vrot.slane %v2176, %v2189
        %v2191 = vcombine.low %v2126, %v2142
        %v2192 = vcombine.high %v2126, %v2142
        %v2194 = vunpack.c.l.s4 1934713408
        %v2195 = vunpack.c.0.s8 %v2194
        %v2196 = vlaneseq
        %v2197 = vshrl.u32 %v2196, 7
        %v2198 = vsub.s32 %v2195, %v2197
        %v2199 = vrot.slane %v2191, %v2198
        %v2201 = vunpack.c.l.s4 1934713408
        %v2202 = vunpack.c.0.s8 %v2201
        %v2203 = vlaneseq
        %v2204 = vshrl.u32 %v2203, 7
        %v2205 = vsub.s32 %v2202, %v2204
        %v2206 = vrot.slane %v2192, %v2205
        %v2207 = vcombine.low %v2151, %v2167
        %v2208 = vcombine.high %v2151, %v2167
        %v2210 = vunpack.c.l.s4 1934713408
        %v2211 = vunpack.c.0.s8 %v2210
        %v2212 = vlaneseq
        %v2213 = vshrl.u32 %v2212, 7
        %v2214 = vsub.s32 %v2211, %v2213
        %v2215 = vrot.slane %v2207, %v2214
        %v2217 = vunpack.c.l.s4 1934713408
        %v2218 = vunpack.c.0.s8 %v2217
        %v2219 = vlaneseq
        %v2220 = vshrl.u32 %v2219, 7
        %v2221 = vsub.s32 %v2218, %v2220
        %v2222 = vrot.slane %v2208, %v2221
        %v2223 = vcombine.low %v2158, %v2174
        %v2224 = vcombine.high %v2158, %v2174
        %v2226 = vunpack.c.l.s4 1934713408
        %v2227 = vunpack.c.0.s8 %v2226
        %v2228 = vlaneseq
        %v2229 = vshrl.u32 %v2228, 7
        %v2230 = vsub.s32 %v2227, %v2229
        %v2231 = vrot.slane %v2223, %v2230
        %v2233 = vunpack.c.l.s4 1934713408
        %v2234 = vunpack.c.0.s8 %v2233
        %v2235 = vlaneseq
        %v2236 = vshrl.u32 %v2235, 7
        %v2237 = vsub.s32 %v2234, %v2236
        %v2238 = vrot.slane %v2224, %v2237
        %v2239 = vcombine.low %v2183, %v2215
        %v2240 = vcombine.high %v2183, %v2215
        %v2241 = vcombine.low %v2190, %v2222
        %v2242 = vcombine.high %v2190, %v2222
        %v2243 = vcombine.low %v2199, %v2231
        %v2244 = vcombine.high %v2199, %v2231
        %v2245 = vcombine.low %v2206, %v2238
        %v2246 = vcombine.high %v2206, %v2238
        %v2247 = vcombine.low %v1944, %v1948
        %v2248 = vcombine.high %v1944, %v1948
        %v2250 = vunpack.c.l.s4 1983009808
        %v2251 = vunpack.c.0.s8 %v2250
        %v2252 = vlaneseq
        %v2253 = vshrl.u32 %v2252, 7
        %v2254 = vsub.s32 %v2251, %v2253
        %v2255 = vrot.slane %v2247, %v2254
        %v2257 = vunpack.c.l.s4 1983009808
        %v2258 = vunpack.c.0.s8 %v2257
        %v2259 = vlaneseq
        %v2260 = vshrl.u32 %v2259, 7
        %v2261 = vsub.s32 %v2258, %v2260
        %v2262 = vrot.slane %v2248, %v2261
        %v2263 = vcombine.low %v1946, %v1950
        %v2264 = vcombine.high %v1946, %v1950
        %v2266 = vunpack.c.l.s4 1983009808
        %v2267 = vunpack.c.0.s8 %v2266
        %v2268 = vlaneseq
        %v2269 = vshrl.u32 %v2268, 7
        %v2270 = vsub.s32 %v2267, %v2269
        %v2271 = vrot.slane %v2263, %v2270
        %v2273 = vunpack.c.l.s4 1983009808
        %v2274 = vunpack.c.0.s8 %v2273
        %v2275 = vlaneseq
        %v2276 = vshrl.u32 %v2275, 7
        %v2277 = vsub.s32 %v2274, %v2276
        %v2278 = vrot.slane %v2264, %v2277
        %v2279 = vcombine.low %v1952, %v1956
        %v2280 = vcombine.high %v1952, %v1956
        %v2282 = vunpack.c.l.s4 1983009808
        %v2283 = vunpack.c.0.s8 %v2282
        %v2284 = vlaneseq
        %v2285 = vshrl.u32 %v2284, 7
        %v2286 = vsub.s32 %v2283, %v2285
        %v2287 = vrot.slane %v2279, %v2286
        %v2289 = vunpack.c.l.s4 1983009808
        %v2290 = vunpack.c.0.s8 %v2289
        %v2291 = vlaneseq
        %v2292 = vshrl.u32 %v2291, 7
        %v2293 = vsub.s32 %v2290, %v2292
        %v2294 = vrot.slane %v2280, %v2293
        %v2295 = vcombine.low %v1954, %v1958
        %v2296 = vcombine.high %v1954, %v1958
        %v2298 = vunpack.c.l.s4 1983009808
        %v2299 = vunpack.c.0.s8 %v2298
        %v2300 = vlaneseq
        %v2301 = vshrl.u32 %v2300, 7
        %v2302 = vsub.s32 %v2299, %v2301
        %v2303 = vrot.slane %v2295, %v2302
        %v2305 = vunpack.c.l.s4 1983009808
        %v2306 = vunpack.c.0.s8 %v2305
        %v2307 = vlaneseq
        %v2308 = vshrl.u32 %v2307, 7
        %v2309 = vsub.s32 %v2306, %v2308
        %v2310 = vrot.slane %v2296, %v2309
        %v2311 = vcombine.low %v2255, %v2271
        %v2312 = vcombine.high %v2255, %v2271
        %v2314 = vunpack.c.l.s4 1934713408
        %v2315 = vunpack.c.0.s8 %v2314
        %v2316 = vlaneseq
        %v2317 = vshrl.u32 %v2316, 7
        %v2318 = vsub.s32 %v2315, %v2317
        %v2319 = vrot.slane %v2311, %v2318
        %v2321 = vunpack.c.l.s4 1934713408
        %v2322 = vunpack.c.0.s8 %v2321
        %v2323 = vlaneseq
        %v2324 = vshrl.u32 %v2323, 7
        %v2325 = vsub.s32 %v2322, %v2324
        %v2326 = vrot.slane %v2312, %v2325
        %v2327 = vcombine.low %v2262, %v2278
        %v2328 = vcombine.high %v2262, %v2278
        %v2330 = vunpack.c.l.s4 1934713408
        %v2331 = vunpack.c.0.s8 %v2330
        %v2332 = vlaneseq
        %v2333 = vshrl.u32 %v2332, 7
        %v2334 = vsub.s32 %v2331, %v2333
        %v2335 = vrot.slane %v2327, %v2334
        %v2337 = vunpack.c.l.s4 1934713408
        %v2338 = vunpack.c.0.s8 %v2337
        %v2339 = vlaneseq
        %v2340 = vshrl.u32 %v2339, 7
        %v2341 = vsub.s32 %v2338, %v2340
        %v2342 = vrot.slane %v2328, %v2341
        %v2343 = vcombine.low %v2287, %v2303
        %v2344 = vcombine.high %v2287, %v2303
        %v2346 = vunpack.c.l.s4 1934713408
        %v2347 = vunpack.c.0.s8 %v2346
        %v2348 = vlaneseq
        %v2349 = vshrl.u32 %v2348, 7
        %v2350 = vsub.s32 %v2347, %v2349
        %v2351 = vrot.slane %v2343, %v2350
        %v2353 = vunpack.c.l.s4 1934713408
        %v2354 = vunpack.c.0.s8 %v2353
        %v2355 = vlaneseq
        %v2356 = vshrl.u32 %v2355, 7
        %v2357 = vsub.s32 %v2354, %v2356
        %v2358 = vrot.slane %v2344, %v2357
        %v2359 = vcombine.low %v2294, %v2310
        %v2360 = vcombine.high %v2294, %v2310
        %v2362 = vunpack.c.l.s4 1934713408
        %v2363 = vunpack.c.0.s8 %v2362
        %v2364 = vlaneseq
        %v2365 = vshrl.u32 %v2364, 7
        %v2366 = vsub.s32 %v2363, %v2365
        %v2367 = vrot.slane %v2359, %v2366
        %v2369 = vunpack.c.l.s4 1934713408
        %v2370 = vunpack.c.0.s8 %v2369
        %v2371 = vlaneseq
        %v2372 = vshrl.u32 %v2371, 7
        %v2373 = vsub.s32 %v2370, %v2372
        %v2374 = vrot.slane %v2360, %v2373
        %v2375 = vcombine.low %v2319, %v2351
        %v2376 = vcombine.high %v2319, %v2351
        %v2377 = vcombine.low %v2326, %v2358
        %v2378 = vcombine.high %v2326, %v2358
        %v2379 = vcombine.low %v2335, %v2367
        %v2380 = vcombine.high %v2335, %v2367
        %v2381 = vcombine.low %v2342, %v2374
        %v2382 = vcombine.high %v2342, %v2374
        %v2383 = vcombine.low %v1960, %v1964
        %v2384 = vcombine.high %v1960, %v1964
        %v2386 = vunpack.c.l.s4 1983009808
        %v2387 = vunpack.c.0.s8 %v2386
        %v2388 = vlaneseq
        %v2389 = vshrl.u32 %v2388, 7
        %v2390 = vsub.s32 %v2387, %v2389
        %v2391 = vrot.slane %v2383, %v2390
        %v2393 = vunpack.c.l.s4 1983009808
        %v2394 = vunpack.c.0.s8 %v2393
        %v2395 = vlaneseq
        %v2396 = vshrl.u32 %v2395, 7
        %v2397 = vsub.s32 %v2394, %v2396
        %v2398 = vrot.slane %v2384, %v2397
        %v2399 = vcombine.low %v1962, %v1966
        %v2400 = vcombine.high %v1962, %v1966
        %v2402 = vunpack.c.l.s4 1983009808
        %v2403 = vunpack.c.0.s8 %v2402
        %v2404 = vlaneseq
        %v2405 = vshrl.u32 %v2404, 7
        %v2406 = vsub.s32 %v2403, %v2405
        %v2407 = vrot.slane %v2399, %v2406
        %v2409 = vunpack.c.l.s4 1983009808
        %v2410 = vunpack.c.0.s8 %v2409
        %v2411 = vlaneseq
        %v2412 = vshrl.u32 %v2411, 7
        %v2413 = vsub.s32 %v2410, %v2412
        %v2414 = vrot.slane %v2400, %v2413
        %v2415 = vcombine.low %v1968, %v1972
        %v2416 = vcombine.high %v1968, %v1972
        %v2418 = vunpack.c.l.s4 1983009808
        %v2419 = vunpack.c.0.s8 %v2418
        %v2420 = vlaneseq
        %v2421 = vshrl.u32 %v2420, 7
        %v2422 = vsub.s32 %v2419, %v2421
        %v2423 = vrot.slane %v2415, %v2422
        %v2425 = vunpack.c.l.s4 1983009808
        %v2426 = vunpack.c.0.s8 %v2425
        %v2427 = vlaneseq
        %v2428 = vshrl.u32 %v2427, 7
        %v2429 = vsub.s32 %v2426, %v2428
        %v2430 = vrot.slane %v2416, %v2429
        %v2431 = vcombine.low %v1970, %v1974
        %v2432 = vcombine.high %v1970, %v1974
        %v2434 = vunpack.c.l.s4 1983009808
        %v2435 = vunpack.c.0.s8 %v2434
        %v2436 = vlaneseq
        %v2437 = vshrl.u32 %v2436, 7
        %v2438 = vsub.s32 %v2435, %v2437
        %v2439 = vrot.slane %v2431, %v2438
        %v2441 = vunpack.c.l.s4 1983009808
        %v2442 = vunpack.c.0.s8 %v2441
        %v2443 = vlaneseq
        %v2444 = vshrl.u32 %v2443, 7
        %v2445 = vsub.s32 %v2442, %v2444
        %v2446 = vrot.slane %v2432, %v2445
        %v2447 = vcombine.low %v2391, %v2407
        %v2448 = vcombine.high %v2391, %v2407
        %v2450 = vunpack.c.l.s4 1934713408
        %v2451 = vunpack.c.0.s8 %v2450
        %v2452 = vlaneseq
        %v2453 = vshrl.u32 %v2452, 7
        %v2454 = vsub.s32 %v2451, %v2453
        %v2455 = vrot.slane %v2447, %v2454
        %v2457 = vunpack.c.l.s4 1934713408
        %v2458 = vunpack.c.0.s8 %v2457
        %v2459 = vlaneseq
        %v2460 = vshrl.u32 %v2459, 7
        %v2461 = vsub.s32 %v2458, %v2460
        %v2462 = vrot.slane %v2448, %v2461
        %v2463 = vcombine.low %v2398, %v2414
        %v2464 = vcombine.high %v2398, %v2414
        %v2466 = vunpack.c.l.s4 1934713408
        %v2467 = vunpack.c.0.s8 %v2466
        %v2468 = vlaneseq
        %v2469 = vshrl.u32 %v2468, 7
        %v2470 = vsub.s32 %v2467, %v2469
        %v2471 = vrot.slane %v2463, %v2470
        %v2473 = vunpack.c.l.s4 1934713408
        %v2474 = vunpack.c.0.s8 %v2473
        %v2475 = vlaneseq
        %v2476 = vshrl.u32 %v2475, 7
        %v2477 = vsub.s32 %v2474, %v2476
        %v2478 = vrot.slane %v2464, %v2477
        %v2479 = vcombine.low %v2423, %v2439
        %v2480 = vcombine.high %v2423, %v2439
        %v2482 = vunpack.c.l.s4 1934713408
        %v2483 = vunpack.c.0.s8 %v2482
        %v2484 = vlaneseq
        %v2485 = vshrl.u32 %v2484, 7
        %v2486 = vsub.s32 %v2483, %v2485
        %v2487 = vrot.slane %v2479, %v2486
        %v2489 = vunpack.c.l.s4 1934713408
        %v2490 = vunpack.c.0.s8 %v2489
        %v2491 = vlaneseq
        %v2492 = vshrl.u32 %v2491, 7
        %v2493 = vsub.s32 %v2490, %v2492
        %v2494 = vrot.slane %v2480, %v2493
        %v2495 = vcombine.low %v2430, %v2446
        %v2496 = vcombine.high %v2430, %v2446
        %v2498 = vunpack.c.l.s4 1934713408
        %v2499 = vunpack.c.0.s8 %v2498
        %v2500 = vlaneseq
        %v2501 = vshrl.u32 %v2500, 7
        %v2502 = vsub.s32 %v2499, %v2501
        %v2503 = vrot.slane %v2495, %v2502
        %v2505 = vunpack.c.l.s4 1934713408
        %v2506 = vunpack.c.0.s8 %v2505
        %v2507 = vlaneseq
        %v2508 = vshrl.u32 %v2507, 7
        %v2509 = vsub.s32 %v2506, %v2508
        %v2510 = vrot.slane %v2496, %v2509
        %v2511 = vcombine.low %v2455, %v2487
        %v2512 = vcombine.high %v2455, %v2487
        %v2513 = vcombine.low %v2462, %v2494
        %v2514 = vcombine.high %v2462, %v2494
        %v2515 = vcombine.low %v2471, %v2503
        %v2516 = vcombine.high %v2471, %v2503
        %v2517 = vcombine.low %v2478, %v2510
        %v2518 = vcombine.high %v2478, %v2510
        %2521 = vrot.lane.b32.xlu0 %v2104, 32
        %v2522 = vpop.permute.xlu0 %2521
        %2523 = vrot.lane.b32.xlu0 %v2240, 32
        %v2524 = vpop.permute.xlu0 %2523
        %2529 = vrot.lane.b32.xlu0 %v2105, 64
        %v2530 = vpop.permute.xlu0 %2529
        %2531 = vrot.lane.b32.xlu0 %v2241, 64
        %v2532 = vpop.permute.xlu0 %2531
        %2537 = vrot.lane.b32.xlu0 %v2106, 96
        %v2538 = vpop.permute.xlu0 %2537
        %2539 = vrot.lane.b32.xlu0 %v2242, 96
        %v2540 = vpop.permute.xlu0 %2539
        %2545 = vrot.lane.b32.xlu0 %v2108, 32
        %v2546 = vpop.permute.xlu0 %2545
        %2547 = vrot.lane.b32.xlu0 %v2244, 32
        %v2548 = vpop.permute.xlu0 %2547
        %2553 = vrot.lane.b32.xlu0 %v2109, 64
        %v2554 = vpop.permute.xlu0 %2553
        %2555 = vrot.lane.b32.xlu0 %v2245, 64
        %v2556 = vpop.permute.xlu0 %2555
        %2561 = vrot.lane.b32.xlu0 %v2110, 96
        %v2562 = vpop.permute.xlu0 %2561
        %2563 = vrot.lane.b32.xlu0 %v2246, 96
        %v2564 = vpop.permute.xlu0 %2563
        %2569 = vrot.lane.b32.xlu0 %v2376, 32
        %v2570 = vpop.permute.xlu0 %2569
        %2571 = vrot.lane.b32.xlu0 %v2512, 32
        %v2572 = vpop.permute.xlu0 %2571
        %2577 = vrot.lane.b32.xlu0 %v2377, 64
        %v2578 = vpop.permute.xlu0 %2577
        %2579 = vrot.lane.b32.xlu0 %v2513, 64
        %v2580 = vpop.permute.xlu0 %2579
        %2585 = vrot.lane.b32.xlu0 %v2378, 96
        %v2586 = vpop.permute.xlu0 %2585
        %2587 = vrot.lane.b32.xlu0 %v2514, 96
        %v2588 = vpop.permute.xlu0 %2587
        %2593 = vrot.lane.b32.xlu0 %v2380, 32
        %v2594 = vpop.permute.xlu0 %2593
        %2595 = vrot.lane.b32.xlu0 %v2516, 32
        %v2596 = vpop.permute.xlu0 %2595
        %2601 = vrot.lane.b32.xlu0 %v2381, 64
        %v2602 = vpop.permute.xlu0 %2601
        %2603 = vrot.lane.b32.xlu0 %v2517, 64
        %v2604 = vpop.permute.xlu0 %2603
        %2609 = vrot.lane.b32.xlu0 %v2382, 96
        %v2610 = vpop.permute.xlu0 %2609
        %2611 = vrot.lane.b32.xlu0 %v2518, 96
        %v2612 = vpop.permute.xlu0 %2611
        %v2615 = vsel %vm737, %v2103, %v2522
        %v2616 = vsel %vm737, %v2239, %v2524
        %vm2617 = vcmask 523264
        %v2618 = vsel %vm2617, %v2615, %v2530
        %v2619 = vsel %vm2617, %v2616, %v2532
        %v2620 = vsel %vm1303, %v2618, %v2538
        %v2621 = vsel %vm1303, %v2619, %v2540
        %v2622 = vsel %vm737, %v2107, %v2546
        %v2623 = vsel %vm737, %v2243, %v2548
        %v2624 = vsel %vm2617, %v2622, %v2554
        %v2625 = vsel %vm2617, %v2623, %v2556
        %v2626 = vsel %vm1303, %v2624, %v2562
        %v2627 = vsel %vm1303, %v2625, %v2564
        %v2628 = vsel %vm737, %v2375, %v2570
        %v2629 = vsel %vm737, %v2511, %v2572
        %v2630 = vsel %vm2617, %v2628, %v2578
        %v2631 = vsel %vm2617, %v2629, %v2580
        %v2632 = vsel %vm1303, %v2630, %v2586
        %v2633 = vsel %vm1303, %v2631, %v2588
        %v2634 = vsel %vm737, %v2379, %v2594
        %v2635 = vsel %vm737, %v2515, %v2596
        %v2636 = vsel %vm2617, %v2634, %v2602
        %v2637 = vsel %vm2617, %v2635, %v2604
        %v2638 = vsel %vm1303, %v2636, %v2610
        %v2639 = vsel %vm1303, %v2637, %v2612
        %2640 = vst [vmem:[%s297] sm:$0xff] %v2620
        %2641 = vst [vmem:[%s297 + $0x8] sm:$0xff] %v2626
        %2642 = vst [vmem:[%s297 + $0x10] sm:$0xff] %v2632
        %2643 = vst [vmem:[%s297 + $0x18] sm:$0xff] %v2638
        %2644 = vst [vmem:[%s297 + $0x20] sm:$0xff] %v2621
        %2645 = vst [vmem:[%s297 + $0x28] sm:$0xff] %v2627
        %2646 = vst [vmem:[%s297 + $0x30] sm:$0xff] %v2633
        %2647 = vst [vmem:[%s297 + $0x38] sm:$0xff] %v2639
        %s2648 = sand.u32 %s156, 1
        %s2649 = scalar_lea.sflag [#allocation4], %s2648
        %s2650 = sand.u32 %s156, 1
        %s2651 = smul.addr %s2650, 64
        %s2652 = scalar_lea.vmem [#allocation10], %s2651
        // Predicated region
        $region53: #{tpu_custom_call.1} parent=35 // pred_check
          %p2653 = pneg %p166
        $region54: #{tpu_custom_call.1} parent=35 // pred_check_branch
          %2655 = sbr.rel (%p2653) target = $region56
        $region55: #{tpu_custom_call.1} parent=35 // pred_region
          %s2656 = smul.u32 2, %s29
          %s2658 = ssub.s32 1024, 1024
          %2659 = vsyncadd %s2649, %s2658
          %s2660 = smul.addr %s2656, 4
          %s2661 = smul.addr %s28, 8
          %s2662 = sadd.s32 %s2660, %s2661
          %s2663 = smul.addr %s2662, 128
          %s2664 = scalar_lea.hbm %s4, %s2663
          %s2665 = sshll.u32 %s2652, 4
          %s2666 = int_to_ptr.vmem [resolvable:$true] %s2665
          %2671 = dma.vmem_to_hbm [thread:$0]  %s2666, 1024, %s2664, %s2649, 512, 512, 32
        $region56: #{tpu_custom_call.1} parent=35 // pred_fallthru
          _
      $region36: #{tpu_custom_call.1} parent=5 // pred_fallthru
        _
      %p2672 = scmp.le.s32.totalorder 2, %s18
      // Predicated region
      $region57: #{tpu_custom_call.1} parent=5 // pred_check
        %p2673 = pneg %p2672
      $region58: #{tpu_custom_call.1} parent=5 // pred_check_branch
        %2675 = sbr.rel (%p2673) target = $region60
      $region59: #{tpu_custom_call.1} parent=5 // pred_region
        %s2676 = ssub.s32 %s18, 2
        // Predicated region
        $region61: #{tpu_custom_call.1} parent=59 // pred_check
          %p2677 = pneg %p172
        $region62: #{tpu_custom_call.1} parent=59 // pred_check_branch
          %2679 = sbr.rel (%p2677) target = $region64
        $region63: #{tpu_custom_call.1} parent=59 // pred_region
          %s2680 = sand.u32 %s157, 1
          %s2681 = scalar_lea.sflag [#allocation4], %s2680
          %s2682 = sand.u32 %s157, 1
          %s2683 = smul.addr %s2682, 64
          %s2684 = scalar_lea.vmem [#allocation10], %s2683
          %2685 = dma.done %s2681, 1024
        $region64: #{tpu_custom_call.1} parent=59 // pred_fallthru
          _
      $region60: #{tpu_custom_call.1} parent=5 // pred_fallthru
        _
    $region6: #{tpu_custom_call.1} parent=1 // loop_footer
      %s22 = sadd.s32 1, %s18
    $region7: #{tpu_custom_call.1} parent=1 // loop_footer_branch
      %17 = sbr.rel target = $region3
    $region8: #{tpu_custom_call.1} parent=1 // loop_exit
      _
    %2686 = vsyncpa [#allocation3], 1
    %s2687 = scalar_lea.sflag [#allocation3], 1
    %2688 = vsyncpa %s2687, 1
    %2689 = vsyncpa [#allocation6], 1
    %2690 = vsyncpa [#allocation9], 1
    %2691 = vsyncpa [#allocation4], 1
    %s2692 = scalar_lea.sflag [#allocation4], 1
    %2693 = vsyncpa %s2692, 1

</llo_original>
